<compile_context>
chip_gen: v7x
topology: tpu7x:2x2x1
jax: 0.10.0
libtpu: 0.0.40
codegen_flags: <defaults>
</compile_context>

<pallas_src>
import jax
import jax.numpy as jnp
from jax.experimental import pallas as pl
from jax.experimental.pallas import tpu as pltpu


def _round_up(n, m):
    return ((n + m - 1) // m) * m


def _sigmoid(x):
    # One EUP op (tanh) instead of exp + reciprocal.
    return 0.5 * jnp.tanh(0.5 * x) + 0.5


def _solver_kernel(x_ref, wih_ref, whh_ref, b_ref, wfc_ref, bfc_ref,
                   out_ref, gx_ref):
    TB, D = x_ref.shape            # (T*Bp, D), bf16, time-major
    G = wih_ref.shape[1]           # 4 * Hp
    Hp = G // 4
    Bp = out_ref.shape[0]
    T = TB // Bp                   # static

    # ---- Phase 0: hoisted input projection — one large MXU GEMM, no reshape ----
    gx = jnp.dot(x_ref[...], wih_ref[...], preferred_element_type=jnp.float32)
    gx_ref[...] = (gx + b_ref[...]).astype(jnp.bfloat16)   # bf16 scratch, flat

    # ---- Phase 1: serial recurrence inside the kernel (no grid steps) ----
    def step(t, carry):
        h, c = carry                                        # f32 (Bp, Hp)
        row = pl.multiple_of(t * Bp, Bp)                    # Bp-aligned (bf16 tile)
        gx_t = gx_ref[pl.ds(row, Bp), :].astype(jnp.float32)
        gates = gx_t + jnp.dot(h.astype(jnp.bfloat16), whh_ref[...],
                               preferred_element_type=jnp.float32)
        # Hp is a multiple of 128 -> these slices are vreg/lane aligned.
        i_g = _sigmoid(gates[:, 0 * Hp:1 * Hp])
        f_g = _sigmoid(gates[:, 1 * Hp:2 * Hp])
        g_g = jnp.tanh(gates[:, 2 * Hp:3 * Hp])
        o_g = _sigmoid(gates[:, 3 * Hp:4 * Hp])
        c = f_g * c + i_g * g_g
        h = o_g * jnp.tanh(c)
        return h, c

    h0 = jnp.zeros((Bp, Hp), jnp.float32)
    c0 = jnp.zeros((Bp, Hp), jnp.float32)
    # Fixed modest unroll: gives the scheduler cross-iteration visibility without
    # blowing up code size / vreg live ranges for large T.
    h_T, _ = jax.lax.fori_loop(0, T, step, (h0, c0), unroll=min(8, T))

    # ---- Final Linear on the last hidden state (lane-dense padded output) ----
    out_ref[...] = (jnp.dot(h_T.astype(jnp.bfloat16), wfc_ref[...],
                            preferred_element_type=jnp.float32)
                    + bfc_ref[...]).astype(out_ref.dtype)


def _vmem_limit_bytes(T, Bp, D, G, Hp, Op):
    need = (T * Bp * D * 2                      # x (bf16)
            + T * Bp * G * 2                    # gates_x scratch (bf16)
            + (D * G + Hp * G + Hp * Op) * 2    # weights (bf16)
            + (G + Op) * 4                      # biases (f32)
            + Bp * Op * 4                       # output (f32)
            + 8 * Bp * G * 4)                   # per-step temporaries headroom
    return min(max(int(need * 1.5) + (4 << 20), 16 << 20), 64 << 20)


def solver_forward(x, params):
    """x: (B, T, D) float32 (batch_first, like PyTorch). Returns (B, output_dim)."""
    w_ih, w_hh, b_ih, b_hh, w_fc, b_fc = (
        params["w_ih"], params["w_hh"], params["b_ih"], params["b_hh"],
        params["w_fc"], params["b_fc"])

    B, T, D = x.shape
    H = w_hh.shape[1]
    O = w_fc.shape[0]

    Hp = _round_up(H, 128)         # lane-align gate blocks
    Op = _round_up(O, 128)         # lane-dense output store
    Bp = _round_up(B, 16)          # align to bf16 sublane packing (gx slicing)
    G = 4 * Hp

    # Pack / pad weights: PyTorch gate order (i, f, g, o), each gate block padded
    # to Hp.  Padded rows/cols are zero so padded lanes never leak into real
    # outputs (padded c/h lanes stay exactly 0).
    bias = b_ih + b_hh
    wih_p = jnp.zeros((D, G), jnp.float32)
    whh_p = jnp.zeros((Hp, G), jnp.float32)
    bias_p = jnp.zeros((1, G), jnp.float32)
    for k in range(4):
        wih_p = wih_p.at[:, k * Hp:k * Hp + H].set(w_ih[k * H:(k + 1) * H, :].T)
        whh_p = whh_p.at[:H, k * Hp:k * Hp + H].set(w_hh[k * H:(k + 1) * H, :].T)
        bias_p = bias_p.at[0, k * Hp:k * Hp + H].set(bias[k * H:(k + 1) * H])
    wfc_p = jnp.zeros((Hp, Op), jnp.float32).at[:H, :O].set(w_fc.T)
    bfc_p = jnp.zeros((1, Op), jnp.float32).at[0, :O].set(b_fc)

    # Time-major, batch-padded, bf16, and ALREADY flattened to (T*Bp, D) so the
    # kernel never reshapes (x is read exactly once; this pre-pass fuses in XLA).
    x_tm = jnp.transpose(x, (1, 0, 2))                              # (T, B, D)
    x_p = (jnp.zeros((T, Bp, D), jnp.float32)
           .at[:, :B, :].set(x_tm)
           .reshape(T * Bp, D)
           .astype(jnp.bfloat16))

    vmem_spec = pl.BlockSpec(memory_space=pltpu.MemorySpace.VMEM)

    out_p = pl.pallas_call(
        _solver_kernel,
        out_shape=jax.ShapeDtypeStruct((Bp, Op), jnp.float32),
        # No grid, whole-array VMEM placement: inputs are staged once and
        # single-buffered (no pipeline double-buffering of x / weights).
        in_specs=[vmem_spec] * 6,
        out_specs=vmem_spec,
        scratch_shapes=[
            pltpu.VMEM((T * Bp, G), jnp.bfloat16),   # hoisted gates_x (flat, bf16)
        ],
        compiler_params=pltpu.CompilerParams(
            vmem_limit_bytes=_vmem_limit_bytes(T, Bp, D, G, Hp, Op)),
    )(x_p, wih_p.astype(jnp.bfloat16), whh_p.astype(jnp.bfloat16), bias_p,
      wfc_p.astype(jnp.bfloat16), bfc_p)

    return out_p[:B, :O]


def init_params(key, input_dim, hidden_dim, output_dim):
    """Deterministic synthetic init (PyTorch-style uniform(-1/sqrt(H), 1/sqrt(H)))."""
    ks = jax.random.split(key, 6)
    k_lstm = 1.0 / jnp.sqrt(hidden_dim)
    k_fc = 1.0 / jnp.sqrt(hidden_dim)
    u = lambda k, shape, s: jax.random.uniform(k, shape, jnp.float32, -s, s)
    return {
        "w_ih": u(ks[0], (4 * hidden_dim, input_dim), k_lstm),
        "w_hh": u(ks[1], (4 * hidden_dim, hidden_dim), k_lstm),
        "b_ih": u(ks[2], (4 * hidden_dim,), k_lstm),
        "b_hh": u(ks[3], (4 * hidden_dim,), k_lstm),
        "w_fc": u(ks[4], (output_dim, hidden_dim), k_fc),
        "b_fc": u(ks[5], (output_dim,), k_fc),
    }


def _reference_forward(x, params):
    """Pure-JAX f32 reference matching PyTorch nn.LSTM (1 layer) + nn.Linear."""
    w_ih, w_hh = params["w_ih"], params["w_hh"]
    b = params["b_ih"] + params["b_hh"]
    B, T, D = x.shape
    H = w_hh.shape[1]

    def step(carry, x_t):
        h, c = carry
        gates = x_t @ w_ih.T + h @ w_hh.T + b
        i = jax.nn.sigmoid(gates[:, 0 * H:1 * H])
        f = jax.nn.sigmoid(gates[:, 1 * H:2 * H])
        g = jnp.tanh(gates[:, 2 * H:3 * H])
        o = jax.nn.sigmoid(gates[:, 3 * H:4 * H])
        c = f * c + i * g
        h = o * jnp.tanh(c)
        return (h, c), None

    h0 = jnp.zeros((B, H), jnp.float32)
    c0 = jnp.zeros((B, H), jnp.float32)
    (h_T, _), _ = jax.lax.scan(step, (h0, c0), jnp.transpose(x, (1, 0, 2)))
    return h_T @ params["w_fc"].T + params["b_fc"]


if __name__ == "__main__":
    input_dim, hidden_dim, output_dim = 16, 32, 8
    B, T = 2, 8

    key = jax.random.PRNGKey(0)
    k_x, k_p = jax.random.split(key)
    x = jax.random.normal(k_x, (B, T, input_dim), jnp.float32)
    params = init_params(k_p, input_dim, hidden_dim, output_dim)

    out = solver_forward(x, params)
    out = jax.block_until_ready(out)

    ref = _reference_forward(x, params)
    assert out.shape == (B, output_dim)
    # bf16 matmul operands + bf16 gates_x scratch (f32 accumulation / carry)
    # => bf16-level tolerance vs the pure-f32 reference.
    assert jnp.allclose(out, ref, atol=3e-2, rtol=3e-2), "mismatch vs reference"

    print("KERNEL_OK")
</pallas_src>

<mosaic_0001>
module attributes {stable_mosaic.version = 11 : i64} {
  func.func @_solver_kernel(%arg0: memref<128x16xbf16, #tpu.memory_space<vmem>>, %arg1: memref<16x512xbf16, #tpu.memory_space<vmem>>, %arg2: memref<128x512xbf16, #tpu.memory_space<vmem>>, %arg3: memref<1x512xf32, #tpu.memory_space<vmem>>, %arg4: memref<128x128xbf16, #tpu.memory_space<vmem>>, %arg5: memref<1x128xf32, #tpu.memory_space<vmem>>, %arg6: memref<16x128xf32, #tpu.memory_space<vmem>>, %arg7: memref<128x512xbf16, #tpu.memory_space<vmem>>) attributes {dimension_semantics = [], scalar_prefetch = 0 : i64, scratch_operands = 1 : i64, tpu.core_type = #tpu.core_type<tc>} {
    %c0 = arith.constant 0 : index
    %c0_0 = arith.constant 0 : index
    %0 = vector.load %arg0[%c0, %c0_0] : memref<128x16xbf16, #tpu.memory_space<vmem>>, vector<128x16xbf16>
    %c0_1 = arith.constant 0 : index
    %c0_2 = arith.constant 0 : index
    %1 = vector.load %arg1[%c0_1, %c0_2] : memref<16x512xbf16, #tpu.memory_space<vmem>>, vector<16x512xbf16>
    %cst = arith.constant dense<0.000000e+00> : vector<128x512xf32>
    %2 = tpu.matmul %0, %1, %cst {dimension_numbers = #tpu.dot_dimension_numbers<[1], [0], [0], [1], [0, 0, 1, 1], [], []>} : vector<128x16xbf16>, vector<16x512xbf16>, vector<128x512xf32> -> vector<128x512xf32>
    %c0_3 = arith.constant 0 : index
    %c0_4 = arith.constant 0 : index
    %3 = vector.load %arg3[%c0_3, %c0_4] : memref<1x512xf32, #tpu.memory_space<vmem>>, vector<1x512xf32>
    %4 = vector.broadcast %3 : vector<1x512xf32> to vector<128x512xf32>
    %5 = arith.addf %2, %4 : vector<128x512xf32>
    %6 = arith.truncf %5 : vector<128x512xf32> to vector<128x512xbf16>
    %c0_5 = arith.constant 0 : index
    %c0_6 = arith.constant 0 : index
    %7 = vector.load %arg7[%c0_5, %c0_6] : memref<128x512xbf16, #tpu.memory_space<vmem>>, vector<128x512xbf16>
    tpu.vector_store %arg7[%c0_5, %c0_6], %6 {strides = array<i32>} : memref<128x512xbf16, #tpu.memory_space<vmem>>, vector<128x512xbf16>,
    %cst_7 = arith.constant 0.000000e+00 : f32
    %8 = vector.broadcast %cst_7 : f32 to vector<16x128xf32>
    %cst_8 = arith.constant 0.000000e+00 : f32
    %9 = vector.broadcast %cst_8 : f32 to vector<16x128xf32>
    %c0_i32 = arith.constant 0 : i32
    %c16_i32 = arith.constant 16 : i32
    %10 = arith.muli %c0_i32, %c16_i32 : i32
    %11 = tpu.assume_multiple %10, 16 : i32
    %12 = arith.index_cast %11 : i32 to index
    %c0_9 = arith.constant 0 : index
    %13 = vector.load %arg7[%12, %c0_9] : memref<128x512xbf16, #tpu.memory_space<vmem>>, vector<16x512xbf16>
    %14 = arith.extf %13 : vector<16x512xbf16> to vector<16x512xf32>
    %15 = arith.truncf %8 : vector<16x128xf32> to vector<16x128xbf16>
    %c0_10 = arith.constant 0 : index
    %c0_11 = arith.constant 0 : index
    %16 = vector.load %arg2[%c0_10, %c0_11] : memref<128x512xbf16, #tpu.memory_space<vmem>>, vector<128x512xbf16>
    %cst_12 = arith.constant dense<0.000000e+00> : vector<16x512xf32>
    %17 = tpu.matmul %15, %16, %cst_12 {dimension_numbers = #tpu.dot_dimension_numbers<[1], [0], [0], [1], [0, 0, 1, 1], [], []>} : vector<16x128xbf16>, vector<128x512xbf16>, vector<16x512xf32> -> vector<16x512xf32>
    %18 = arith.addf %14, %17 : vector<16x512xf32>
    %19 = vector.extract_strided_slice %18 {offsets = [0, 0], sizes = [16, 128], strides = [1, 1]} : vector<16x512xf32> to vector<16x128xf32>
    %cst_13 = arith.constant 5.000000e-01 : f32
    %20 = vector.broadcast %cst_13 : f32 to vector<16x128xf32>
    %21 = arith.mulf %20, %19 : vector<16x128xf32>
    %22 = math.tanh %21 : vector<16x128xf32>
    %cst_14 = arith.constant 5.000000e-01 : f32
    %23 = vector.broadcast %cst_14 : f32 to vector<16x128xf32>
    %24 = arith.mulf %23, %22 : vector<16x128xf32>
    %cst_15 = arith.constant 5.000000e-01 : f32
    %25 = vector.broadcast %cst_15 : f32 to vector<16x128xf32>
    %26 = arith.addf %24, %25 : vector<16x128xf32>
    %27 = vector.extract_strided_slice %18 {offsets = [0, 128], sizes = [16, 128], strides = [1, 1]} : vector<16x512xf32> to vector<16x128xf32>
    %cst_16 = arith.constant 5.000000e-01 : f32
    %28 = vector.broadcast %cst_16 : f32 to vector<16x128xf32>
    %29 = arith.mulf %28, %27 : vector<16x128xf32>
    %30 = math.tanh %29 : vector<16x128xf32>
    %cst_17 = arith.constant 5.000000e-01 : f32
    %31 = vector.broadcast %cst_17 : f32 to vector<16x128xf32>
    %32 = arith.mulf %31, %30 : vector<16x128xf32>
    %cst_18 = arith.constant 5.000000e-01 : f32
    %33 = vector.broadcast %cst_18 : f32 to vector<16x128xf32>
    %34 = arith.addf %32, %33 : vector<16x128xf32>
    %35 = vector.extract_strided_slice %18 {offsets = [0, 256], sizes = [16, 128], strides = [1, 1]} : vector<16x512xf32> to vector<16x128xf32>
    %36 = math.tanh %35 : vector<16x128xf32>
    %37 = vector.extract_strided_slice %18 {offsets = [0, 384], sizes = [16, 128], strides = [1, 1]} : vector<16x512xf32> to vector<16x128xf32>
    %cst_19 = arith.constant 5.000000e-01 : f32
    %38 = vector.broadcast %cst_19 : f32 to vector<16x128xf32>
    %39 = arith.mulf %38, %37 : vector<16x128xf32>
    %40 = math.tanh %39 : vector<16x128xf32>
    %cst_20 = arith.constant 5.000000e-01 : f32
    %41 = vector.broadcast %cst_20 : f32 to vector<16x128xf32>
    %42 = arith.mulf %41, %40 : vector<16x128xf32>
    %cst_21 = arith.constant 5.000000e-01 : f32
    %43 = vector.broadcast %cst_21 : f32 to vector<16x128xf32>
    %44 = arith.addf %42, %43 : vector<16x128xf32>
    %45 = arith.mulf %34, %9 : vector<16x128xf32>
    %46 = arith.mulf %26, %36 : vector<16x128xf32>
    %47 = arith.addf %45, %46 : vector<16x128xf32>
    %48 = math.tanh %47 : vector<16x128xf32>
    %49 = arith.mulf %44, %48 : vector<16x128xf32>
    %c1_i32 = arith.constant 1 : i32
    %c16_i32_22 = arith.constant 16 : i32
    %50 = arith.muli %c1_i32, %c16_i32_22 : i32
    %51 = tpu.assume_multiple %50, 16 : i32
    %52 = arith.index_cast %51 : i32 to index
    %c0_23 = arith.constant 0 : index
    %53 = vector.load %arg7[%52, %c0_23] : memref<128x512xbf16, #tpu.memory_space<vmem>>, vector<16x512xbf16>
    %54 = arith.extf %53 : vector<16x512xbf16> to vector<16x512xf32>
    %55 = arith.truncf %49 : vector<16x128xf32> to vector<16x128xbf16>
    %c0_24 = arith.constant 0 : index
    %c0_25 = arith.constant 0 : index
    %56 = vector.load %arg2[%c0_24, %c0_25] : memref<128x512xbf16, #tpu.memory_space<vmem>>, vector<128x512xbf16>
    %cst_26 = arith.constant dense<0.000000e+00> : vector<16x512xf32>
    %57 = tpu.matmul %55, %56, %cst_26 {dimension_numbers = #tpu.dot_dimension_numbers<[1], [0], [0], [1], [0, 0, 1, 1], [], []>} : vector<16x128xbf16>, vector<128x512xbf16>, vector<16x512xf32> -> vector<16x512xf32>
    %58 = arith.addf %54, %57 : vector<16x512xf32>
    %59 = vector.extract_strided_slice %58 {offsets = [0, 0], sizes = [16, 128], strides = [1, 1]} : vector<16x512xf32> to vector<16x128xf32>
    %cst_27 = arith.constant 5.000000e-01 : f32
    %60 = vector.broadcast %cst_27 : f32 to vector<16x128xf32>
    %61 = arith.mulf %60, %59 : vector<16x128xf32>
    %62 = math.tanh %61 : vector<16x128xf32>
    %cst_28 = arith.constant 5.000000e-01 : f32
    %63 = vector.broadcast %cst_28 : f32 to vector<16x128xf32>
    %64 = arith.mulf %63, %62 : vector<16x128xf32>
    %cst_29 = arith.constant 5.000000e-01 : f32
    %65 = vector.broadcast %cst_29 : f32 to vector<16x128xf32>
    %66 = arith.addf %64, %65 : vector<16x128xf32>
    %67 = vector.extract_strided_slice %58 {offsets = [0, 128], sizes = [16, 128], strides = [1, 1]} : vector<16x512xf32> to vector<16x128xf32>
    %cst_30 = arith.constant 5.000000e-01 : f32
    %68 = vector.broadcast %cst_30 : f32 to vector<16x128xf32>
    %69 = arith.mulf %68, %67 : vector<16x128xf32>
    %70 = math.tanh %69 : vector<16x128xf32>
    %cst_31 = arith.constant 5.000000e-01 : f32
    %71 = vector.broadcast %cst_31 : f32 to vector<16x128xf32>
    %72 = arith.mulf %71, %70 : vector<16x128xf32>
    %cst_32 = arith.constant 5.000000e-01 : f32
    %73 = vector.broadcast %cst_32 : f32 to vector<16x128xf32>
    %74 = arith.addf %72, %73 : vector<16x128xf32>
    %75 = vector.extract_strided_slice %58 {offsets = [0, 256], sizes = [16, 128], strides = [1, 1]} : vector<16x512xf32> to vector<16x128xf32>
    %76 = math.tanh %75 : vector<16x128xf32>
    %77 = vector.extract_strided_slice %58 {offsets = [0, 384], sizes = [16, 128], strides = [1, 1]} : vector<16x512xf32> to vector<16x128xf32>
    %cst_33 = arith.constant 5.000000e-01 : f32
    %78 = vector.broadcast %cst_33 : f32 to vector<16x128xf32>
    %79 = arith.mulf %78, %77 : vector<16x128xf32>
    %80 = math.tanh %79 : vector<16x128xf32>
    %cst_34 = arith.constant 5.000000e-01 : f32
    %81 = vector.broadcast %cst_34 : f32 to vector<16x128xf32>
    %82 = arith.mulf %81, %80 : vector<16x128xf32>
    %cst_35 = arith.constant 5.000000e-01 : f32
    %83 = vector.broadcast %cst_35 : f32 to vector<16x128xf32>
    %84 = arith.addf %82, %83 : vector<16x128xf32>
    %85 = arith.mulf %74, %47 : vector<16x128xf32>
    %86 = arith.mulf %66, %76 : vector<16x128xf32>
    %87 = arith.addf %85, %86 : vector<16x128xf32>
    %88 = math.tanh %87 : vector<16x128xf32>
    %89 = arith.mulf %84, %88 : vector<16x128xf32>
    %c2_i32 = arith.constant 2 : i32
    %c16_i32_36 = arith.constant 16 : i32
    %90 = arith.muli %c2_i32, %c16_i32_36 : i32
    %91 = tpu.assume_multiple %90, 16 : i32
    %92 = arith.index_cast %91 : i32 to index
    %c0_37 = arith.constant 0 : index
    %93 = vector.load %arg7[%92, %c0_37] : memref<128x512xbf16, #tpu.memory_space<vmem>>, vector<16x512xbf16>
    %94 = arith.extf %93 : vector<16x512xbf16> to vector<16x512xf32>
    %95 = arith.truncf %89 : vector<16x128xf32> to vector<16x128xbf16>
    %c0_38 = arith.constant 0 : index
    %c0_39 = arith.constant 0 : index
    %96 = vector.load %arg2[%c0_38, %c0_39] : memref<128x512xbf16, #tpu.memory_space<vmem>>, vector<128x512xbf16>
    %cst_40 = arith.constant dense<0.000000e+00> : vector<16x512xf32>
    %97 = tpu.matmul %95, %96, %cst_40 {dimension_numbers = #tpu.dot_dimension_numbers<[1], [0], [0], [1], [0, 0, 1, 1], [], []>} : vector<16x128xbf16>, vector<128x512xbf16>, vector<16x512xf32> -> vector<16x512xf32>
    %98 = arith.addf %94, %97 : vector<16x512xf32>
    %99 = vector.extract_strided_slice %98 {offsets = [0, 0], sizes = [16, 128], strides = [1, 1]} : vector<16x512xf32> to vector<16x128xf32>
    %cst_41 = arith.constant 5.000000e-01 : f32
    %100 = vector.broadcast %cst_41 : f32 to vector<16x128xf32>
    %101 = arith.mulf %100, %99 : vector<16x128xf32>
    %102 = math.tanh %101 : vector<16x128xf32>
    %cst_42 = arith.constant 5.000000e-01 : f32
    %103 = vector.broadcast %cst_42 : f32 to vector<16x128xf32>
    %104 = arith.mulf %103, %102 : vector<16x128xf32>
    %cst_43 = arith.constant 5.000000e-01 : f32
    %105 = vector.broadcast %cst_43 : f32 to vector<16x128xf32>
    %106 = arith.addf %104, %105 : vector<16x128xf32>
    %107 = vector.extract_strided_slice %98 {offsets = [0, 128], sizes = [16, 128], strides = [1, 1]} : vector<16x512xf32> to vector<16x128xf32>
    %cst_44 = arith.constant 5.000000e-01 : f32
    %108 = vector.broadcast %cst_44 : f32 to vector<16x128xf32>
    %109 = arith.mulf %108, %107 : vector<16x128xf32>
    %110 = math.tanh %109 : vector<16x128xf32>
    %cst_45 = arith.constant 5.000000e-01 : f32
    %111 = vector.broadcast %cst_45 : f32 to vector<16x128xf32>
    %112 = arith.mulf %111, %110 : vector<16x128xf32>
    %cst_46 = arith.constant 5.000000e-01 : f32
    %113 = vector.broadcast %cst_46 : f32 to vector<16x128xf32>
    %114 = arith.addf %112, %113 : vector<16x128xf32>
    %115 = vector.extract_strided_slice %98 {offsets = [0, 256], sizes = [16, 128], strides = [1, 1]} : vector<16x512xf32> to vector<16x128xf32>
    %116 = math.tanh %115 : vector<16x128xf32>
    %117 = vector.extract_strided_slice %98 {offsets = [0, 384], sizes = [16, 128], strides = [1, 1]} : vector<16x512xf32> to vector<16x128xf32>
    %cst_47 = arith.constant 5.000000e-01 : f32
    %118 = vector.broadcast %cst_47 : f32 to vector<16x128xf32>
    %119 = arith.mulf %118, %117 : vector<16x128xf32>
    %120 = math.tanh %119 : vector<16x128xf32>
    %cst_48 = arith.constant 5.000000e-01 : f32
    %121 = vector.broadcast %cst_48 : f32 to vector<16x128xf32>
    %122 = arith.mulf %121, %120 : vector<16x128xf32>
    %cst_49 = arith.constant 5.000000e-01 : f32
    %123 = vector.broadcast %cst_49 : f32 to vector<16x128xf32>
    %124 = arith.addf %122, %123 : vector<16x128xf32>
    %125 = arith.mulf %114, %87 : vector<16x128xf32>
    %126 = arith.mulf %106, %116 : vector<16x128xf32>
    %127 = arith.addf %125, %126 : vector<16x128xf32>
    %128 = math.tanh %127 : vector<16x128xf32>
    %129 = arith.mulf %124, %128 : vector<16x128xf32>
    %c3_i32 = arith.constant 3 : i32
    %c16_i32_50 = arith.constant 16 : i32
    %130 = arith.muli %c3_i32, %c16_i32_50 : i32
    %131 = tpu.assume_multiple %130, 16 : i32
    %132 = arith.index_cast %131 : i32 to index
    %c0_51 = arith.constant 0 : index
    %133 = vector.load %arg7[%132, %c0_51] : memref<128x512xbf16, #tpu.memory_space<vmem>>, vector<16x512xbf16>
    %134 = arith.extf %133 : vector<16x512xbf16> to vector<16x512xf32>
    %135 = arith.truncf %129 : vector<16x128xf32> to vector<16x128xbf16>
    %c0_52 = arith.constant 0 : index
    %c0_53 = arith.constant 0 : index
    %136 = vector.load %arg2[%c0_52, %c0_53] : memref<128x512xbf16, #tpu.memory_space<vmem>>, vector<128x512xbf16>
    %cst_54 = arith.constant dense<0.000000e+00> : vector<16x512xf32>
    %137 = tpu.matmul %135, %136, %cst_54 {dimension_numbers = #tpu.dot_dimension_numbers<[1], [0], [0], [1], [0, 0, 1, 1], [], []>} : vector<16x128xbf16>, vector<128x512xbf16>, vector<16x512xf32> -> vector<16x512xf32>
    %138 = arith.addf %134, %137 : vector<16x512xf32>
    %139 = vector.extract_strided_slice %138 {offsets = [0, 0], sizes = [16, 128], strides = [1, 1]} : vector<16x512xf32> to vector<16x128xf32>
    %cst_55 = arith.constant 5.000000e-01 : f32
    %140 = vector.broadcast %cst_55 : f32 to vector<16x128xf32>
    %141 = arith.mulf %140, %139 : vector<16x128xf32>
    %142 = math.tanh %141 : vector<16x128xf32>
    %cst_56 = arith.constant 5.000000e-01 : f32
    %143 = vector.broadcast %cst_56 : f32 to vector<16x128xf32>
    %144 = arith.mulf %143, %142 : vector<16x128xf32>
    %cst_57 = arith.constant 5.000000e-01 : f32
    %145 = vector.broadcast %cst_57 : f32 to vector<16x128xf32>
    %146 = arith.addf %144, %145 : vector<16x128xf32>
    %147 = vector.extract_strided_slice %138 {offsets = [0, 128], sizes = [16, 128], strides = [1, 1]} : vector<16x512xf32> to vector<16x128xf32>
    %cst_58 = arith.constant 5.000000e-01 : f32
    %148 = vector.broadcast %cst_58 : f32 to vector<16x128xf32>
    %149 = arith.mulf %148, %147 : vector<16x128xf32>
    %150 = math.tanh %149 : vector<16x128xf32>
    %cst_59 = arith.constant 5.000000e-01 : f32
    %151 = vector.broadcast %cst_59 : f32 to vector<16x128xf32>
    %152 = arith.mulf %151, %150 : vector<16x128xf32>
    %cst_60 = arith.constant 5.000000e-01 : f32
    %153 = vector.broadcast %cst_60 : f32 to vector<16x128xf32>
    %154 = arith.addf %152, %153 : vector<16x128xf32>
    %155 = vector.extract_strided_slice %138 {offsets = [0, 256], sizes = [16, 128], strides = [1, 1]} : vector<16x512xf32> to vector<16x128xf32>
    %156 = math.tanh %155 : vector<16x128xf32>
    %157 = vector.extract_strided_slice %138 {offsets = [0, 384], sizes = [16, 128], strides = [1, 1]} : vector<16x512xf32> to vector<16x128xf32>
    %cst_61 = arith.constant 5.000000e-01 : f32
    %158 = vector.broadcast %cst_61 : f32 to vector<16x128xf32>
    %159 = arith.mulf %158, %157 : vector<16x128xf32>
    %160 = math.tanh %159 : vector<16x128xf32>
    %cst_62 = arith.constant 5.000000e-01 : f32
    %161 = vector.broadcast %cst_62 : f32 to vector<16x128xf32>
    %162 = arith.mulf %161, %160 : vector<16x128xf32>
    %cst_63 = arith.constant 5.000000e-01 : f32
    %163 = vector.broadcast %cst_63 : f32 to vector<16x128xf32>
    %164 = arith.addf %162, %163 : vector<16x128xf32>
    %165 = arith.mulf %154, %127 : vector<16x128xf32>
    %166 = arith.mulf %146, %156 : vector<16x128xf32>
    %167 = arith.addf %165, %166 : vector<16x128xf32>
    %168 = math.tanh %167 : vector<16x128xf32>
    %169 = arith.mulf %164, %168 : vector<16x128xf32>
    %c4_i32 = arith.constant 4 : i32
    %c16_i32_64 = arith.constant 16 : i32
    %170 = arith.muli %c4_i32, %c16_i32_64 : i32
    %171 = tpu.assume_multiple %170, 16 : i32
    %172 = arith.index_cast %171 : i32 to index
    %c0_65 = arith.constant 0 : index
    %173 = vector.load %arg7[%172, %c0_65] : memref<128x512xbf16, #tpu.memory_space<vmem>>, vector<16x512xbf16>
    %174 = arith.extf %173 : vector<16x512xbf16> to vector<16x512xf32>
    %175 = arith.truncf %169 : vector<16x128xf32> to vector<16x128xbf16>
    %c0_66 = arith.constant 0 : index
    %c0_67 = arith.constant 0 : index
    %176 = vector.load %arg2[%c0_66, %c0_67] : memref<128x512xbf16, #tpu.memory_space<vmem>>, vector<128x512xbf16>
    %cst_68 = arith.constant dense<0.000000e+00> : vector<16x512xf32>
    %177 = tpu.matmul %175, %176, %cst_68 {dimension_numbers = #tpu.dot_dimension_numbers<[1], [0], [0], [1], [0, 0, 1, 1], [], []>} : vector<16x128xbf16>, vector<128x512xbf16>, vector<16x512xf32> -> vector<16x512xf32>
    %178 = arith.addf %174, %177 : vector<16x512xf32>
    %179 = vector.extract_strided_slice %178 {offsets = [0, 0], sizes = [16, 128], strides = [1, 1]} : vector<16x512xf32> to vector<16x128xf32>
    %cst_69 = arith.constant 5.000000e-01 : f32
    %180 = vector.broadcast %cst_69 : f32 to vector<16x128xf32>
    %181 = arith.mulf %180, %179 : vector<16x128xf32>
    %182 = math.tanh %181 : vector<16x128xf32>
    %cst_70 = arith.constant 5.000000e-01 : f32
    %183 = vector.broadcast %cst_70 : f32 to vector<16x128xf32>
    %184 = arith.mulf %183, %182 : vector<16x128xf32>
    %cst_71 = arith.constant 5.000000e-01 : f32
    %185 = vector.broadcast %cst_71 : f32 to vector<16x128xf32>
    %186 = arith.addf %184, %185 : vector<16x128xf32>
    %187 = vector.extract_strided_slice %178 {offsets = [0, 128], sizes = [16, 128], strides = [1, 1]} : vector<16x512xf32> to vector<16x128xf32>
    %cst_72 = arith.constant 5.000000e-01 : f32
    %188 = vector.broadcast %cst_72 : f32 to vector<16x128xf32>
    %189 = arith.mulf %188, %187 : vector<16x128xf32>
    %190 = math.tanh %189 : vector<16x128xf32>
    %cst_73 = arith.constant 5.000000e-01 : f32
    %191 = vector.broadcast %cst_73 : f32 to vector<16x128xf32>
    %192 = arith.mulf %191, %190 : vector<16x128xf32>
    %cst_74 = arith.constant 5.000000e-01 : f32
    %193 = vector.broadcast %cst_74 : f32 to vector<16x128xf32>
    %194 = arith.addf %192, %193 : vector<16x128xf32>
    %195 = vector.extract_strided_slice %178 {offsets = [0, 256], sizes = [16, 128], strides = [1, 1]} : vector<16x512xf32> to vector<16x128xf32>
    %196 = math.tanh %195 : vector<16x128xf32>
    %197 = vector.extract_strided_slice %178 {offsets = [0, 384], sizes = [16, 128], strides = [1, 1]} : vector<16x512xf32> to vector<16x128xf32>
    %cst_75 = arith.constant 5.000000e-01 : f32
    %198 = vector.broadcast %cst_75 : f32 to vector<16x128xf32>
    %199 = arith.mulf %198, %197 : vector<16x128xf32>
    %200 = math.tanh %199 : vector<16x128xf32>
    %cst_76 = arith.constant 5.000000e-01 : f32
    %201 = vector.broadcast %cst_76 : f32 to vector<16x128xf32>
    %202 = arith.mulf %201, %200 : vector<16x128xf32>
    %cst_77 = arith.constant 5.000000e-01 : f32
    %203 = vector.broadcast %cst_77 : f32 to vector<16x128xf32>
    %204 = arith.addf %202, %203 : vector<16x128xf32>
    %205 = arith.mulf %194, %167 : vector<16x128xf32>
    %206 = arith.mulf %186, %196 : vector<16x128xf32>
    %207 = arith.addf %205, %206 : vector<16x128xf32>
    %208 = math.tanh %207 : vector<16x128xf32>
    %209 = arith.mulf %204, %208 : vector<16x128xf32>
    %c5_i32 = arith.constant 5 : i32
    %c16_i32_78 = arith.constant 16 : i32
    %210 = arith.muli %c5_i32, %c16_i32_78 : i32
    %211 = tpu.assume_multiple %210, 16 : i32
    %212 = arith.index_cast %211 : i32 to index
    %c0_79 = arith.constant 0 : index
    %213 = vector.load %arg7[%212, %c0_79] : memref<128x512xbf16, #tpu.memory_space<vmem>>, vector<16x512xbf16>
    %214 = arith.extf %213 : vector<16x512xbf16> to vector<16x512xf32>
    %215 = arith.truncf %209 : vector<16x128xf32> to vector<16x128xbf16>
    %c0_80 = arith.constant 0 : index
    %c0_81 = arith.constant 0 : index
    %216 = vector.load %arg2[%c0_80, %c0_81] : memref<128x512xbf16, #tpu.memory_space<vmem>>, vector<128x512xbf16>
    %cst_82 = arith.constant dense<0.000000e+00> : vector<16x512xf32>
    %217 = tpu.matmul %215, %216, %cst_82 {dimension_numbers = #tpu.dot_dimension_numbers<[1], [0], [0], [1], [0, 0, 1, 1], [], []>} : vector<16x128xbf16>, vector<128x512xbf16>, vector<16x512xf32> -> vector<16x512xf32>
    %218 = arith.addf %214, %217 : vector<16x512xf32>
    %219 = vector.extract_strided_slice %218 {offsets = [0, 0], sizes = [16, 128], strides = [1, 1]} : vector<16x512xf32> to vector<16x128xf32>
    %cst_83 = arith.constant 5.000000e-01 : f32
    %220 = vector.broadcast %cst_83 : f32 to vector<16x128xf32>
    %221 = arith.mulf %220, %219 : vector<16x128xf32>
    %222 = math.tanh %221 : vector<16x128xf32>
    %cst_84 = arith.constant 5.000000e-01 : f32
    %223 = vector.broadcast %cst_84 : f32 to vector<16x128xf32>
    %224 = arith.mulf %223, %222 : vector<16x128xf32>
    %cst_85 = arith.constant 5.000000e-01 : f32
    %225 = vector.broadcast %cst_85 : f32 to vector<16x128xf32>
    %226 = arith.addf %224, %225 : vector<16x128xf32>
    %227 = vector.extract_strided_slice %218 {offsets = [0, 128], sizes = [16, 128], strides = [1, 1]} : vector<16x512xf32> to vector<16x128xf32>
    %cst_86 = arith.constant 5.000000e-01 : f32
    %228 = vector.broadcast %cst_86 : f32 to vector<16x128xf32>
    %229 = arith.mulf %228, %227 : vector<16x128xf32>
    %230 = math.tanh %229 : vector<16x128xf32>
    %cst_87 = arith.constant 5.000000e-01 : f32
    %231 = vector.broadcast %cst_87 : f32 to vector<16x128xf32>
    %232 = arith.mulf %231, %230 : vector<16x128xf32>
    %cst_88 = arith.constant 5.000000e-01 : f32
    %233 = vector.broadcast %cst_88 : f32 to vector<16x128xf32>
    %234 = arith.addf %232, %233 : vector<16x128xf32>
    %235 = vector.extract_strided_slice %218 {offsets = [0, 256], sizes = [16, 128], strides = [1, 1]} : vector<16x512xf32> to vector<16x128xf32>
    %236 = math.tanh %235 : vector<16x128xf32>
    %237 = vector.extract_strided_slice %218 {offsets = [0, 384], sizes = [16, 128], strides = [1, 1]} : vector<16x512xf32> to vector<16x128xf32>
    %cst_89 = arith.constant 5.000000e-01 : f32
    %238 = vector.broadcast %cst_89 : f32 to vector<16x128xf32>
    %239 = arith.mulf %238, %237 : vector<16x128xf32>
    %240 = math.tanh %239 : vector<16x128xf32>
    %cst_90 = arith.constant 5.000000e-01 : f32
    %241 = vector.broadcast %cst_90 : f32 to vector<16x128xf32>
    %242 = arith.mulf %241, %240 : vector<16x128xf32>
    %cst_91 = arith.constant 5.000000e-01 : f32
    %243 = vector.broadcast %cst_91 : f32 to vector<16x128xf32>
    %244 = arith.addf %242, %243 : vector<16x128xf32>
    %245 = arith.mulf %234, %207 : vector<16x128xf32>
    %246 = arith.mulf %226, %236 : vector<16x128xf32>
    %247 = arith.addf %245, %246 : vector<16x128xf32>
    %248 = math.tanh %247 : vector<16x128xf32>
    %249 = arith.mulf %244, %248 : vector<16x128xf32>
    %c6_i32 = arith.constant 6 : i32
    %c16_i32_92 = arith.constant 16 : i32
    %250 = arith.muli %c6_i32, %c16_i32_92 : i32
    %251 = tpu.assume_multiple %250, 16 : i32
    %252 = arith.index_cast %251 : i32 to index
    %c0_93 = arith.constant 0 : index
    %253 = vector.load %arg7[%252, %c0_93] : memref<128x512xbf16, #tpu.memory_space<vmem>>, vector<16x512xbf16>
    %254 = arith.extf %253 : vector<16x512xbf16> to vector<16x512xf32>
    %255 = arith.truncf %249 : vector<16x128xf32> to vector<16x128xbf16>
    %c0_94 = arith.constant 0 : index
    %c0_95 = arith.constant 0 : index
    %256 = vector.load %arg2[%c0_94, %c0_95] : memref<128x512xbf16, #tpu.memory_space<vmem>>, vector<128x512xbf16>
    %cst_96 = arith.constant dense<0.000000e+00> : vector<16x512xf32>
    %257 = tpu.matmul %255, %256, %cst_96 {dimension_numbers = #tpu.dot_dimension_numbers<[1], [0], [0], [1], [0, 0, 1, 1], [], []>} : vector<16x128xbf16>, vector<128x512xbf16>, vector<16x512xf32> -> vector<16x512xf32>
    %258 = arith.addf %254, %257 : vector<16x512xf32>
    %259 = vector.extract_strided_slice %258 {offsets = [0, 0], sizes = [16, 128], strides = [1, 1]} : vector<16x512xf32> to vector<16x128xf32>
    %cst_97 = arith.constant 5.000000e-01 : f32
    %260 = vector.broadcast %cst_97 : f32 to vector<16x128xf32>
    %261 = arith.mulf %260, %259 : vector<16x128xf32>
    %262 = math.tanh %261 : vector<16x128xf32>
    %cst_98 = arith.constant 5.000000e-01 : f32
    %263 = vector.broadcast %cst_98 : f32 to vector<16x128xf32>
    %264 = arith.mulf %263, %262 : vector<16x128xf32>
    %cst_99 = arith.constant 5.000000e-01 : f32
    %265 = vector.broadcast %cst_99 : f32 to vector<16x128xf32>
    %266 = arith.addf %264, %265 : vector<16x128xf32>
    %267 = vector.extract_strided_slice %258 {offsets = [0, 128], sizes = [16, 128], strides = [1, 1]} : vector<16x512xf32> to vector<16x128xf32>
    %cst_100 = arith.constant 5.000000e-01 : f32
    %268 = vector.broadcast %cst_100 : f32 to vector<16x128xf32>
    %269 = arith.mulf %268, %267 : vector<16x128xf32>
    %270 = math.tanh %269 : vector<16x128xf32>
    %cst_101 = arith.constant 5.000000e-01 : f32
    %271 = vector.broadcast %cst_101 : f32 to vector<16x128xf32>
    %272 = arith.mulf %271, %270 : vector<16x128xf32>
    %cst_102 = arith.constant 5.000000e-01 : f32
    %273 = vector.broadcast %cst_102 : f32 to vector<16x128xf32>
    %274 = arith.addf %272, %273 : vector<16x128xf32>
    %275 = vector.extract_strided_slice %258 {offsets = [0, 256], sizes = [16, 128], strides = [1, 1]} : vector<16x512xf32> to vector<16x128xf32>
    %276 = math.tanh %275 : vector<16x128xf32>
    %277 = vector.extract_strided_slice %258 {offsets = [0, 384], sizes = [16, 128], strides = [1, 1]} : vector<16x512xf32> to vector<16x128xf32>
    %cst_103 = arith.constant 5.000000e-01 : f32
    %278 = vector.broadcast %cst_103 : f32 to vector<16x128xf32>
    %279 = arith.mulf %278, %277 : vector<16x128xf32>
    %280 = math.tanh %279 : vector<16x128xf32>
    %cst_104 = arith.constant 5.000000e-01 : f32
    %281 = vector.broadcast %cst_104 : f32 to vector<16x128xf32>
    %282 = arith.mulf %281, %280 : vector<16x128xf32>
    %cst_105 = arith.constant 5.000000e-01 : f32
    %283 = vector.broadcast %cst_105 : f32 to vector<16x128xf32>
    %284 = arith.addf %282, %283 : vector<16x128xf32>
    %285 = arith.mulf %274, %247 : vector<16x128xf32>
    %286 = arith.mulf %266, %276 : vector<16x128xf32>
    %287 = arith.addf %285, %286 : vector<16x128xf32>
    %288 = math.tanh %287 : vector<16x128xf32>
    %289 = arith.mulf %284, %288 : vector<16x128xf32>
    %c7_i32 = arith.constant 7 : i32
    %c16_i32_106 = arith.constant 16 : i32
    %290 = arith.muli %c7_i32, %c16_i32_106 : i32
    %291 = tpu.assume_multiple %290, 16 : i32
    %292 = arith.index_cast %291 : i32 to index
    %c0_107 = arith.constant 0 : index
    %293 = vector.load %arg7[%292, %c0_107] : memref<128x512xbf16, #tpu.memory_space<vmem>>, vector<16x512xbf16>
    %294 = arith.extf %293 : vector<16x512xbf16> to vector<16x512xf32>
    %295 = arith.truncf %289 : vector<16x128xf32> to vector<16x128xbf16>
    %c0_108 = arith.constant 0 : index
    %c0_109 = arith.constant 0 : index
    %296 = vector.load %arg2[%c0_108, %c0_109] : memref<128x512xbf16, #tpu.memory_space<vmem>>, vector<128x512xbf16>
    %cst_110 = arith.constant dense<0.000000e+00> : vector<16x512xf32>
    %297 = tpu.matmul %295, %296, %cst_110 {dimension_numbers = #tpu.dot_dimension_numbers<[1], [0], [0], [1], [0, 0, 1, 1], [], []>} : vector<16x128xbf16>, vector<128x512xbf16>, vector<16x512xf32> -> vector<16x512xf32>
    %298 = arith.addf %294, %297 : vector<16x512xf32>
    %299 = vector.extract_strided_slice %298 {offsets = [0, 0], sizes = [16, 128], strides = [1, 1]} : vector<16x512xf32> to vector<16x128xf32>
    %cst_111 = arith.constant 5.000000e-01 : f32
    %300 = vector.broadcast %cst_111 : f32 to vector<16x128xf32>
    %301 = arith.mulf %300, %299 : vector<16x128xf32>
    %302 = math.tanh %301 : vector<16x128xf32>
    %cst_112 = arith.constant 5.000000e-01 : f32
    %303 = vector.broadcast %cst_112 : f32 to vector<16x128xf32>
    %304 = arith.mulf %303, %302 : vector<16x128xf32>
    %cst_113 = arith.constant 5.000000e-01 : f32
    %305 = vector.broadcast %cst_113 : f32 to vector<16x128xf32>
    %306 = arith.addf %304, %305 : vector<16x128xf32>
    %307 = vector.extract_strided_slice %298 {offsets = [0, 128], sizes = [16, 128], strides = [1, 1]} : vector<16x512xf32> to vector<16x128xf32>
    %cst_114 = arith.constant 5.000000e-01 : f32
    %308 = vector.broadcast %cst_114 : f32 to vector<16x128xf32>
    %309 = arith.mulf %308, %307 : vector<16x128xf32>
    %310 = math.tanh %309 : vector<16x128xf32>
    %cst_115 = arith.constant 5.000000e-01 : f32
    %311 = vector.broadcast %cst_115 : f32 to vector<16x128xf32>
    %312 = arith.mulf %311, %310 : vector<16x128xf32>
    %cst_116 = arith.constant 5.000000e-01 : f32
    %313 = vector.broadcast %cst_116 : f32 to vector<16x128xf32>
    %314 = arith.addf %312, %313 : vector<16x128xf32>
    %315 = vector.extract_strided_slice %298 {offsets = [0, 256], sizes = [16, 128], strides = [1, 1]} : vector<16x512xf32> to vector<16x128xf32>
    %316 = math.tanh %315 : vector<16x128xf32>
    %317 = vector.extract_strided_slice %298 {offsets = [0, 384], sizes = [16, 128], strides = [1, 1]} : vector<16x512xf32> to vector<16x128xf32>
    %cst_117 = arith.constant 5.000000e-01 : f32
    %318 = vector.broadcast %cst_117 : f32 to vector<16x128xf32>
    %319 = arith.mulf %318, %317 : vector<16x128xf32>
    %320 = math.tanh %319 : vector<16x128xf32>
    %cst_118 = arith.constant 5.000000e-01 : f32
    %321 = vector.broadcast %cst_118 : f32 to vector<16x128xf32>
    %322 = arith.mulf %321, %320 : vector<16x128xf32>
    %cst_119 = arith.constant 5.000000e-01 : f32
    %323 = vector.broadcast %cst_119 : f32 to vector<16x128xf32>
    %324 = arith.addf %322, %323 : vector<16x128xf32>
    %325 = arith.mulf %314, %287 : vector<16x128xf32>
    %326 = arith.mulf %306, %316 : vector<16x128xf32>
    %327 = arith.addf %325, %326 : vector<16x128xf32>
    %328 = math.tanh %327 : vector<16x128xf32>
    %329 = arith.mulf %324, %328 : vector<16x128xf32>
    %c8_i32 = arith.constant 8 : i32
    %330 = arith.truncf %329 : vector<16x128xf32> to vector<16x128xbf16>
    %c0_120 = arith.constant 0 : index
    %c0_121 = arith.constant 0 : index
    %331 = vector.load %arg4[%c0_120, %c0_121] : memref<128x128xbf16, #tpu.memory_space<vmem>>, vector<128x128xbf16>
    %cst_122 = arith.constant dense<0.000000e+00> : vector<16x128xf32>
    %332 = tpu.matmul %330, %331, %cst_122 {dimension_numbers = #tpu.dot_dimension_numbers<[1], [0], [0], [1], [0, 0, 1, 1], [], []>} : vector<16x128xbf16>, vector<128x128xbf16>, vector<16x128xf32> -> vector<16x128xf32>
    %c0_123 = arith.constant 0 : index
    %c0_124 = arith.constant 0 : index
    %333 = vector.load %arg5[%c0_123, %c0_124] : memref<1x128xf32, #tpu.memory_space<vmem>>, vector<1x128xf32>
    %334 = vector.broadcast %333 : vector<1x128xf32> to vector<16x128xf32>
    %335 = arith.addf %332, %334 : vector<16x128xf32>
    %c0_125 = arith.constant 0 : index
    %c0_126 = arith.constant 0 : index
    %336 = vector.load %arg6[%c0_125, %c0_126] : memref<16x128xf32, #tpu.memory_space<vmem>>, vector<16x128xf32>
    tpu.vector_store %arg6[%c0_125, %c0_126], %335 {strides = array<i32>} : memref<16x128xf32, #tpu.memory_space<vmem>>, vector<16x128xf32>,
    return
  }
}

</mosaic_0001>

<llo_original>
// kernel: tpu_custom_call.1
$region0: #{tpu_custom_call.1}
  #allocation0 [shape = 'u32[]', space=smem, size = 0x4, offset = 0x4, fixed_abs, tag = 'smem constant byte address 0x4 - core index']
  #allocation1 [shape = 'u32[144,128]{1,0:T(1,128)}', space=vmem, size = 0x12000, scoped, tag = 'internal scratch']
  #allocation2 [shape = 'bf16[128,512]{1,0:T(16,128)(2,1)}', space=vmem, size = 0x20000, scoped, tag = 'scratch operand']
  %s0 = inlined_call_operand.vmem [shape: bf16[128,16], index: 0, kind: input, shape index: {}]
  %s1 = inlined_call_operand.hbm [shape: bf16[16,512], index: 1, kind: input, shape index: {}]
  %s2 = inlined_call_operand.hbm [shape: bf16[128,512], index: 2, kind: input, shape index: {}]
  %s3 = inlined_call_operand.vmem [shape: f32[1,512], index: 3, kind: input, shape index: {}]
  %s4 = inlined_call_operand.vmem [shape: bf16[128,128], index: 4, kind: input, shape index: {}]
  %s5 = inlined_call_operand.vmem [shape: f32[1,128], index: 5, kind: input, shape index: {}]
  %s6 = inlined_call_operand.hbm [shape: f32[16,128], index: 6, kind: output, shape index: {}]
  %s7 = sld [smem:[#allocation0]]
  $region42: #{tpu_custom_call.1} parent=0
    _
  %s9 = ssub.s32 1, %s7
  %s10 = scalar_select 0, %s9, %s7
  $region1: #{tpu_custom_call.1} parent=0
    #allocation3 [shape = 'u8[16384]{0}', space=vmem, size = 0x4000, scoped, tag = 'input window, operand 1, single buffered']
    #allocation4 [shape = 's32[1]{0}', space=sflag, size = 0x4, scoped, tag = 'scoped memory for tpu_custom_call.1']
    #allocation5 [shape = 's32[1]{0}', space=sflag, size = 0x4, scoped, tag = 'scoped memory for tpu_custom_call.1']
    #allocation6 [shape = 'u8[131072]{0}', space=vmem, size = 0x20000, scoped, tag = 'input window, operand 2, single buffered']
    #allocation7 [shape = 's32[1]{0}', space=sflag, size = 0x4, scoped, tag = 'scoped memory for tpu_custom_call.1']
    #allocation8 [shape = 'u8[8192]{0}', space=vmem, size = 0x2000, scoped, tag = 'output window, operand 0, single buffered']
    %11 = vsyncpa [#allocation4], 0
    %12 = vsyncpa [#allocation7], 0
    %13 = vsyncpa [#allocation5], 0
    // Predicated region
    $region2: #{tpu_custom_call.1} parent=1 // pred_check
      _
    $region3: #{tpu_custom_call.1} parent=1 // pred_check_branch
      %15 = sbr.rel (0) target = $region5
    $region4: #{tpu_custom_call.1} parent=1 // pred_region
      _
    $region5: #{tpu_custom_call.1} parent=1 // pred_fallthru
      _
    // Predicated region
    $region6: #{tpu_custom_call.1} parent=1 // pred_check
      _
    $region7: #{tpu_custom_call.1} parent=1 // pred_check_branch
      %17 = sbr.rel (0) target = $region9
    $region8: #{tpu_custom_call.1} parent=1 // pred_region
      %s19 = ssub.s32 512, 512
      %20 = vsyncadd [#allocation4], %s19
      %s21 = sshll.u32 [#allocation3], 4
      %s22 = int_to_ptr.vmem [resolvable:$true] %s21
      %27 = dma.hbm_to_vmem [thread:$0]  %s1, 512, %s22, [#allocation4], 256, 256, 16
    $region9: #{tpu_custom_call.1} parent=1 // pred_fallthru
      _
    // Predicated region
    $region10: #{tpu_custom_call.1} parent=1 // pred_check
      _
    $region11: #{tpu_custom_call.1} parent=1 // pred_check_branch
      %29 = sbr.rel (0) target = $region13
    $region12: #{tpu_custom_call.1} parent=1 // pred_region
      %s31 = ssub.s32 4096, 4096
      %32 = vsyncadd [#allocation7], %s31
      %s33 = sshll.u32 [#allocation6], 4
      %s34 = int_to_ptr.vmem [resolvable:$true] %s33
      %39 = dma.hbm_to_vmem [thread:$0]  %s2, 4096, %s34, [#allocation7], 256, 256, 16
    $region13: #{tpu_custom_call.1} parent=1 // pred_fallthru
      _
    // Predicated region
    $region14: #{tpu_custom_call.1} parent=1 // pred_check
      _
    $region15: #{tpu_custom_call.1} parent=1 // pred_check_branch
      %41 = sbr.rel (0) target = $region17
    $region16: #{tpu_custom_call.1} parent=1 // pred_region
      _
    $region17: #{tpu_custom_call.1} parent=1 // pred_fallthru
      _
    // Predicated region
    $region18: #{tpu_custom_call.1} parent=1 // pred_check
      _
    $region19: #{tpu_custom_call.1} parent=1 // pred_check_branch
      %43 = sbr.rel (0) target = $region21
    $region20: #{tpu_custom_call.1} parent=1 // pred_region
      _
    $region21: #{tpu_custom_call.1} parent=1 // pred_fallthru
      _
    // Predicated region
    $region22: #{tpu_custom_call.1} parent=1 // pred_check
      _
    $region23: #{tpu_custom_call.1} parent=1 // pred_check_branch
      %45 = sbr.rel (0) target = $region25
    $region24: #{tpu_custom_call.1} parent=1 // pred_region
      _
    $region25: #{tpu_custom_call.1} parent=1 // pred_fallthru
      _
    // Predicated region
    $region26: #{tpu_custom_call.1} parent=1 // pred_check
      _
    $region27: #{tpu_custom_call.1} parent=1 // pred_check_branch
      %47 = sbr.rel (0) target = $region29
    $region28: #{tpu_custom_call.1} parent=1 // pred_region
      %48 = dma.done [#allocation4], 512
    $region29: #{tpu_custom_call.1} parent=1 // pred_fallthru
      _
    // Predicated region
    $region30: #{tpu_custom_call.1} parent=1 // pred_check
      _
    $region31: #{tpu_custom_call.1} parent=1 // pred_check_branch
      %50 = sbr.rel (0) target = $region33
    $region32: #{tpu_custom_call.1} parent=1 // pred_region
      %51 = dma.done [#allocation7], 4096
    $region33: #{tpu_custom_call.1} parent=1 // pred_fallthru
      _
    %v53 = vld [vmem:[%s0] sm:$0xf]
    %v54 = vld [vmem:[%s0 + $0x4] sm:$0xf]
    %v55 = vld [vmem:[%s0 + $0x8] sm:$0xf]
    %v56 = vld [vmem:[%s0 + $0xc] sm:$0xf]
    %v57 = vld [vmem:[%s0 + $0x10] sm:$0xf]
    %v58 = vld [vmem:[%s0 + $0x14] sm:$0xf]
    %v59 = vld [vmem:[%s0 + $0x18] sm:$0xf]
    %v60 = vld [vmem:[%s0 + $0x1c] sm:$0xf]
    %v61 = vld [vmem:[%s0 + $0x20] sm:$0xf]
    %v62 = vld [vmem:[%s0 + $0x24] sm:$0xf]
    %v63 = vld [vmem:[%s0 + $0x28] sm:$0xf]
    %v64 = vld [vmem:[%s0 + $0x2c] sm:$0xf]
    %v65 = vld [vmem:[%s0 + $0x30] sm:$0xf]
    %v66 = vld [vmem:[%s0 + $0x34] sm:$0xf]
    %v67 = vld [vmem:[%s0 + $0x38] sm:$0xf]
    %v68 = vld [vmem:[%s0 + $0x3c] sm:$0xf]
    %v69 = vld [vmem:[#allocation3] sm:$0xff]
    %v70 = vld [vmem:[#allocation3 + $0x8] sm:$0xff]
    %v71 = vld [vmem:[#allocation3 + $0x10] sm:$0xff]
    %v72 = vld [vmem:[#allocation3 + $0x18] sm:$0xff]
    %v73 = vld [vmem:[%s3] sm:$0xf]
    %v75 = vlaneseq
    %v76 = vshrl.u32 %v75, 7
    %v77 = vsub.s32 0, %v76
    %v78 = vrot.slane %v73, %v77
    %v79 = vlaneseq
    %v80 = vshrl.u32 %v79, 7
    %v81 = vsub.s32 1, %v80
    %v82 = vrot.slane %v73, %v81
    %v83 = vlaneseq
    %v84 = vshrl.u32 %v83, 7
    %v85 = vsub.s32 2, %v84
    %v86 = vrot.slane %v73, %v85
    %v87 = vlaneseq
    %v88 = vshrl.u32 %v87, 7
    %v89 = vsub.s32 3, %v88
    %v90 = vrot.slane %v73, %v89
    %v111 = vunpack.c.l.b16 %v53
    %v112 = vunpack.c.l.b16 %v54
    %v113 = vunpack.c.l.b16 %v55
    %v114 = vunpack.c.l.b16 %v56
    %v115 = vunpack.c.l.b16 %v57
    %v116 = vunpack.c.l.b16 %v58
    %v117 = vunpack.c.l.b16 %v59
    %v118 = vunpack.c.l.b16 %v60
    %v119 = vunpack.c.l.b16 %v61
    %v120 = vunpack.c.l.b16 %v62
    %v121 = vunpack.c.l.b16 %v63
    %v122 = vunpack.c.l.b16 %v64
    %v123 = vunpack.c.l.b16 %v65
    %v124 = vunpack.c.l.b16 %v66
    %v125 = vunpack.c.l.b16 %v67
    %v126 = vunpack.c.l.b16 %v68
    %v127 = vpack.c.b16 %v112, %v111
    %v128 = vpack.c.b16 %v114, %v113
    %v129 = vpack.c.b16 %v116, %v115
    %v130 = vpack.c.b16 %v118, %v117
    %v131 = vpack.c.b16 %v120, %v119
    %v132 = vpack.c.b16 %v122, %v121
    %v133 = vpack.c.b16 %v124, %v123
    %v134 = vpack.c.b16 %v126, %v125
    %v139 = vunpack.c.l.b16 %v69
    %v140 = vunpack.c.h.b16 %v69
    %v141 = vunpack.c.l.b16 %v70
    %v142 = vunpack.c.h.b16 %v70
    %v143 = vunpack.c.l.b16 %v71
    %v144 = vunpack.c.h.b16 %v71
    %v145 = vunpack.c.l.b16 %v72
    %v146 = vunpack.c.h.b16 %v72
    %v147 = vpack.c.b16 %v143, %v139
    %v148 = vpack.c.b16 %v144, %v140
    %v149 = vpack.c.b16 %v145, %v141
    %v150 = vpack.c.b16 %v146, %v142
    %vm155 = vcmask 130048
    %v157 = vsel %vm155, %v127, 0
    %v160 = vsel %vm155, %v128, 0
    %v163 = vsel %vm155, %v129, 0
    %v166 = vsel %vm155, %v130, 0
    %v169 = vsel %vm155, %v131, 0
    %v172 = vsel %vm155, %v132, 0
    %v175 = vsel %vm155, %v133, 0
    %v178 = vsel %vm155, %v134, 0
    %180 = vmatprep.subr.bf16.mxu0 %v148
    %181 = vmatpush1.bf16.msra.mxu0 %v147
    %182 = vmatprep.subr.bf16.mxu0 0
    %183 = vmatpush1.bf16.msra.mxu0 0
    %184 = vmatprep.subr.bf16.mxu0 0
    %185 = vmatpush1.bf16.msra.mxu0 0
    %186 = vmatprep.subr.bf16.mxu0 0
    %187 = vmatpush1.bf16.msra.mxu0 0
    %188 = vmatprep.subr.bf16.mxu0 0
    %189 = vmatpush1.bf16.msra.mxu0 0
    %190 = vmatprep.subr.bf16.mxu0 0
    %191 = vmatpush1.bf16.msra.mxu0 0
    %192 = vmatprep.subr.bf16.mxu0 0
    %193 = vmatpush1.bf16.msra.mxu0 0
    %194 = vmatprep.subr.bf16.mxu0 0
    %195 = vmatpush1.bf16.msra.mxu0 0
    %196 = vmatprep.subr.bf16.mxu0 0
    %197 = vmatpush1.bf16.msra.mxu0 0
    %198 = vmatprep.subr.bf16.mxu0 0
    %199 = vmatpush1.bf16.msra.mxu0 0
    %200 = vmatprep.subr.bf16.mxu0 0
    %201 = vmatpush1.bf16.msra.mxu0 0
    %202 = vmatprep.subr.bf16.mxu0 0
    %203 = vmatpush1.bf16.msra.mxu0 0
    %204 = vmatprep.subr.bf16.mxu0 0
    %205 = vmatpush1.bf16.msra.mxu0 0
    %206 = vmatprep.subr.bf16.mxu0 0
    %207 = vmatpush1.bf16.msra.mxu0 0
    %208 = vmatprep.subr.bf16.mxu0 0
    %209 = vmatpush1.bf16.msra.mxu0 0
    %210 = vmatprep.subr.bf16.mxu0 0
    %211 = vmatpush1.bf16.msra.mxu0 0
    %212 = vmatprep.mubr.bf16.mxu0 0
    %213 = vmatmul.mubr.bf16.gmra.mrb[0].mxu0 %v157
    %v214 = vpop.f32.mrb[0].mxu0
    %v215 = vadd.f32 %v78, %v214
    %v216 = vpop.f32.mrb[0].mxu0
    %v217 = vadd.f32 %v82, %v216
    %v218 = vpop.f32.mrb[0].mxu0
    %v219 = vadd.f32 %v78, %v218
    %v220 = vpop.f32.mrb[0].mxu0
    %v221 = vadd.f32 %v82, %v220
    %222 = vmatprep.mubr.bf16.mxu0 0
    %223 = vmatmul.mubr.bf16.gmra.mrb[0].mxu0 %v160
    %v224 = vpop.f32.mrb[0].mxu0
    %v225 = vadd.f32 %v78, %v224
    %v226 = vpop.f32.mrb[0].mxu0
    %v227 = vadd.f32 %v82, %v226
    %v228 = vpop.f32.mrb[0].mxu0
    %v229 = vadd.f32 %v78, %v228
    %v230 = vpop.f32.mrb[0].mxu0
    %v231 = vadd.f32 %v82, %v230
    %232 = vmatprep.mubr.bf16.mxu0 0
    %233 = vmatmul.mubr.bf16.gmra.mrb[0].mxu0 %v163
    %v234 = vpop.f32.mrb[0].mxu0
    %v235 = vadd.f32 %v78, %v234
    %v236 = vpop.f32.mrb[0].mxu0
    %v237 = vadd.f32 %v82, %v236
    %v238 = vpop.f32.mrb[0].mxu0
    %v239 = vadd.f32 %v78, %v238
    %v240 = vpop.f32.mrb[0].mxu0
    %v241 = vadd.f32 %v82, %v240
    %242 = vmatprep.mubr.bf16.mxu0 0
    %243 = vmatmul.mubr.bf16.gmra.mrb[0].mxu0 %v166
    %v244 = vpop.f32.mrb[0].mxu0
    %v245 = vadd.f32 %v78, %v244
    %v246 = vpop.f32.mrb[0].mxu0
    %v247 = vadd.f32 %v82, %v246
    %v248 = vpop.f32.mrb[0].mxu0
    %v249 = vadd.f32 %v78, %v248
    %v250 = vpop.f32.mrb[0].mxu0
    %v251 = vadd.f32 %v82, %v250
    %252 = vmatprep.mubr.bf16.mxu0 0
    %253 = vmatmul.mubr.bf16.gmra.mrb[0].mxu0 %v169
    %v254 = vpop.f32.mrb[0].mxu0
    %v255 = vadd.f32 %v78, %v254
    %v256 = vpop.f32.mrb[0].mxu0
    %v257 = vadd.f32 %v82, %v256
    %v258 = vpop.f32.mrb[0].mxu0
    %v259 = vadd.f32 %v78, %v258
    %v260 = vpop.f32.mrb[0].mxu0
    %v261 = vadd.f32 %v82, %v260
    %262 = vmatprep.mubr.bf16.mxu0 0
    %263 = vmatmul.mubr.bf16.gmra.mrb[0].mxu0 %v172
    %v264 = vpop.f32.mrb[0].mxu0
    %v265 = vadd.f32 %v78, %v264
    %v266 = vpop.f32.mrb[0].mxu0
    %v267 = vadd.f32 %v82, %v266
    %v268 = vpop.f32.mrb[0].mxu0
    %v269 = vadd.f32 %v78, %v268
    %v270 = vpop.f32.mrb[0].mxu0
    %v271 = vadd.f32 %v82, %v270
    %272 = vmatprep.mubr.bf16.mxu0 0
    %273 = vmatmul.mubr.bf16.gmra.mrb[0].mxu0 %v175
    %v274 = vpop.f32.mrb[0].mxu0
    %v275 = vadd.f32 %v78, %v274
    %v276 = vpop.f32.mrb[0].mxu0
    %v277 = vadd.f32 %v82, %v276
    %v278 = vpop.f32.mrb[0].mxu0
    %v279 = vadd.f32 %v78, %v278
    %v280 = vpop.f32.mrb[0].mxu0
    %v281 = vadd.f32 %v82, %v280
    %282 = vmatprep.mubr.bf16.mxu0 0
    %283 = vmatmul.mubr.bf16.gmra.mrb[0].mxu0 %v178
    %v284 = vpop.f32.mrb[0].mxu0
    %v285 = vadd.f32 %v78, %v284
    %v286 = vpop.f32.mrb[0].mxu0
    %v287 = vadd.f32 %v82, %v286
    %v288 = vpop.f32.mrb[0].mxu0
    %v289 = vadd.f32 %v78, %v288
    %v290 = vpop.f32.mrb[0].mxu0
    %v291 = vadd.f32 %v82, %v290
    %292 = vdwg.mxu0
    %293 = vmatprep.subr.bf16.mxu0 %v150
    %294 = vmatpush1.bf16.msra.mxu0 %v149
    %295 = vmatprep.subr.bf16.mxu0 0
    %296 = vmatpush1.bf16.msra.mxu0 0
    %297 = vmatprep.subr.bf16.mxu0 0
    %298 = vmatpush1.bf16.msra.mxu0 0
    %299 = vmatprep.subr.bf16.mxu0 0
    %300 = vmatpush1.bf16.msra.mxu0 0
    %301 = vmatprep.subr.bf16.mxu0 0
    %302 = vmatpush1.bf16.msra.mxu0 0
    %303 = vmatprep.subr.bf16.mxu0 0
    %304 = vmatpush1.bf16.msra.mxu0 0
    %305 = vmatprep.subr.bf16.mxu0 0
    %306 = vmatpush1.bf16.msra.mxu0 0
    %307 = vmatprep.subr.bf16.mxu0 0
    %308 = vmatpush1.bf16.msra.mxu0 0
    %309 = vmatprep.subr.bf16.mxu0 0
    %310 = vmatpush1.bf16.msra.mxu0 0
    %311 = vmatprep.subr.bf16.mxu0 0
    %312 = vmatpush1.bf16.msra.mxu0 0
    %313 = vmatprep.subr.bf16.mxu0 0
    %314 = vmatpush1.bf16.msra.mxu0 0
    %315 = vmatprep.subr.bf16.mxu0 0
    %316 = vmatpush1.bf16.msra.mxu0 0
    %317 = vmatprep.subr.bf16.mxu0 0
    %318 = vmatpush1.bf16.msra.mxu0 0
    %319 = vmatprep.subr.bf16.mxu0 0
    %320 = vmatpush1.bf16.msra.mxu0 0
    %321 = vmatprep.subr.bf16.mxu0 0
    %322 = vmatpush1.bf16.msra.mxu0 0
    %323 = vmatprep.subr.bf16.mxu0 0
    %324 = vmatpush1.bf16.msra.mxu0 0
    %325 = vmatprep.mubr.bf16.mxu0 0
    %326 = vmatmul.mubr.bf16.gmra.mrb[0].mxu0 %v157
    %v327 = vpop.f32.mrb[0].mxu0
    %v328 = vadd.f32 %v86, %v327
    %v329 = vpop.f32.mrb[0].mxu0
    %v330 = vadd.f32 %v90, %v329
    %v331 = vpop.f32.mrb[0].mxu0
    %v332 = vadd.f32 %v86, %v331
    %v333 = vpop.f32.mrb[0].mxu0
    %v334 = vadd.f32 %v90, %v333
    %335 = vmatprep.mubr.bf16.mxu0 0
    %336 = vmatmul.mubr.bf16.gmra.mrb[0].mxu0 %v160
    %v337 = vpop.f32.mrb[0].mxu0
    %v338 = vadd.f32 %v86, %v337
    %v339 = vpop.f32.mrb[0].mxu0
    %v340 = vadd.f32 %v90, %v339
    %v341 = vpop.f32.mrb[0].mxu0
    %v342 = vadd.f32 %v86, %v341
    %v343 = vpop.f32.mrb[0].mxu0
    %v344 = vadd.f32 %v90, %v343
    %345 = vmatprep.mubr.bf16.mxu0 0
    %346 = vmatmul.mubr.bf16.gmra.mrb[0].mxu0 %v163
    %v347 = vpop.f32.mrb[0].mxu0
    %v348 = vadd.f32 %v86, %v347
    %v349 = vpop.f32.mrb[0].mxu0
    %v350 = vadd.f32 %v90, %v349
    %v351 = vpop.f32.mrb[0].mxu0
    %v352 = vadd.f32 %v86, %v351
    %v353 = vpop.f32.mrb[0].mxu0
    %v354 = vadd.f32 %v90, %v353
    %355 = vmatprep.mubr.bf16.mxu0 0
    %356 = vmatmul.mubr.bf16.gmra.mrb[0].mxu0 %v166
    %v357 = vpop.f32.mrb[0].mxu0
    %v358 = vadd.f32 %v86, %v357
    %v359 = vpop.f32.mrb[0].mxu0
    %v360 = vadd.f32 %v90, %v359
    %v361 = vpop.f32.mrb[0].mxu0
    %v362 = vadd.f32 %v86, %v361
    %v363 = vpop.f32.mrb[0].mxu0
    %v364 = vadd.f32 %v90, %v363
    %365 = vmatprep.mubr.bf16.mxu0 0
    %366 = vmatmul.mubr.bf16.gmra.mrb[0].mxu0 %v169
    %v367 = vpop.f32.mrb[0].mxu0
    %v368 = vadd.f32 %v86, %v367
    %v369 = vpop.f32.mrb[0].mxu0
    %v370 = vadd.f32 %v90, %v369
    %v371 = vpop.f32.mrb[0].mxu0
    %v372 = vadd.f32 %v86, %v371
    %v373 = vpop.f32.mrb[0].mxu0
    %v374 = vadd.f32 %v90, %v373
    %375 = vmatprep.mubr.bf16.mxu0 0
    %376 = vmatmul.mubr.bf16.gmra.mrb[0].mxu0 %v172
    %v377 = vpop.f32.mrb[0].mxu0
    %v378 = vadd.f32 %v86, %v377
    %v379 = vpop.f32.mrb[0].mxu0
    %v380 = vadd.f32 %v90, %v379
    %v381 = vpop.f32.mrb[0].mxu0
    %v382 = vadd.f32 %v86, %v381
    %v383 = vpop.f32.mrb[0].mxu0
    %v384 = vadd.f32 %v90, %v383
    %385 = vmatprep.mubr.bf16.mxu0 0
    %386 = vmatmul.mubr.bf16.gmra.mrb[0].mxu0 %v175
    %v387 = vpop.f32.mrb[0].mxu0
    %v388 = vadd.f32 %v86, %v387
    %v389 = vpop.f32.mrb[0].mxu0
    %v390 = vadd.f32 %v90, %v389
    %v391 = vpop.f32.mrb[0].mxu0
    %v392 = vadd.f32 %v86, %v391
    %v393 = vpop.f32.mrb[0].mxu0
    %v394 = vadd.f32 %v90, %v393
    %395 = vmatprep.mubr.bf16.mxu0 0
    %396 = vmatmul.mubr.bf16.gmra.mrb[0].mxu0 %v178
    %v397 = vpop.f32.mrb[0].mxu0
    %v398 = vadd.f32 %v86, %v397
    %v399 = vpop.f32.mrb[0].mxu0
    %v400 = vadd.f32 %v90, %v399
    %v401 = vpop.f32.mrb[0].mxu0
    %v402 = vadd.f32 %v86, %v401
    %v403 = vpop.f32.mrb[0].mxu0
    %v404 = vadd.f32 %v90, %v403
    %405 = vdwg.mxu0
    %v406 = vpack.c.bf16 %v219, %v215
    %v407 = vpack.c.bf16 %v221, %v217
    %v408 = vpack.c.bf16 %v332, %v328
    %v409 = vpack.c.bf16 %v334, %v330
    %v410 = vpack.c.bf16 %v229, %v225
    %v411 = vpack.c.bf16 %v231, %v227
    %v412 = vpack.c.bf16 %v342, %v338
    %v413 = vpack.c.bf16 %v344, %v340
    %v414 = vpack.c.bf16 %v239, %v235
    %v415 = vpack.c.bf16 %v241, %v237
    %v416 = vpack.c.bf16 %v352, %v348
    %v417 = vpack.c.bf16 %v354, %v350
    %v418 = vpack.c.bf16 %v249, %v245
    %v419 = vpack.c.bf16 %v251, %v247
    %v420 = vpack.c.bf16 %v362, %v358
    %v421 = vpack.c.bf16 %v364, %v360
    %v422 = vpack.c.bf16 %v259, %v255
    %v423 = vpack.c.bf16 %v261, %v257
    %v424 = vpack.c.bf16 %v372, %v368
    %v425 = vpack.c.bf16 %v374, %v370
    %v426 = vpack.c.bf16 %v269, %v265
    %v427 = vpack.c.bf16 %v271, %v267
    %v428 = vpack.c.bf16 %v382, %v378
    %v429 = vpack.c.bf16 %v384, %v380
    %v430 = vpack.c.bf16 %v279, %v275
    %v431 = vpack.c.bf16 %v281, %v277
    %v432 = vpack.c.bf16 %v392, %v388
    %v433 = vpack.c.bf16 %v394, %v390
    %v434 = vpack.c.bf16 %v289, %v285
    %v435 = vpack.c.bf16 %v291, %v287
    %v436 = vpack.c.bf16 %v402, %v398
    %v437 = vpack.c.bf16 %v404, %v400
    %438 = vst [vmem:[#allocation2] sm:$0xff] %v406
    %439 = vst [vmem:[#allocation2 + $0x8] sm:$0xff] %v407
    %440 = vst [vmem:[#allocation2 + $0x10] sm:$0xff] %v408
    %441 = vst [vmem:[#allocation2 + $0x18] sm:$0xff] %v409
    %442 = vst [vmem:[#allocation2 + $0x20] sm:$0xff] %v410
    %443 = vst [vmem:[#allocation2 + $0x28] sm:$0xff] %v411
    %444 = vst [vmem:[#allocation2 + $0x30] sm:$0xff] %v412
    %445 = vst [vmem:[#allocation2 + $0x38] sm:$0xff] %v413
    %446 = vst [vmem:[#allocation2 + $0x40] sm:$0xff] %v414
    %447 = vst [vmem:[#allocation2 + $0x48] sm:$0xff] %v415
    %448 = vst [vmem:[#allocation2 + $0x50] sm:$0xff] %v416
    %449 = vst [vmem:[#allocation2 + $0x58] sm:$0xff] %v417
    %450 = vst [vmem:[#allocation2 + $0x60] sm:$0xff] %v418
    %451 = vst [vmem:[#allocation2 + $0x68] sm:$0xff] %v419
    %452 = vst [vmem:[#allocation2 + $0x70] sm:$0xff] %v420
    %453 = vst [vmem:[#allocation2 + $0x78] sm:$0xff] %v421
    %454 = vst [vmem:[#allocation2 + $0x80] sm:$0xff] %v422
    %455 = vst [vmem:[#allocation2 + $0x88] sm:$0xff] %v423
    %456 = vst [vmem:[#allocation2 + $0x90] sm:$0xff] %v424
    %457 = vst [vmem:[#allocation2 + $0x98] sm:$0xff] %v425
    %458 = vst [vmem:[#allocation2 + $0xa0] sm:$0xff] %v426
    %459 = vst [vmem:[#allocation2 + $0xa8] sm:$0xff] %v427
    %460 = vst [vmem:[#allocation2 + $0xb0] sm:$0xff] %v428
    %461 = vst [vmem:[#allocation2 + $0xb8] sm:$0xff] %v429
    %462 = vst [vmem:[#allocation2 + $0xc0] sm:$0xff] %v430
    %463 = vst [vmem:[#allocation2 + $0xc8] sm:$0xff] %v431
    %464 = vst [vmem:[#allocation2 + $0xd0] sm:$0xff] %v432
    %465 = vst [vmem:[#allocation2 + $0xd8] sm:$0xff] %v433
    %466 = vst [vmem:[#allocation2 + $0xe0] sm:$0xff] %v434
    %467 = vst [vmem:[#allocation2 + $0xe8] sm:$0xff] %v435
    %468 = vst [vmem:[#allocation2 + $0xf0] sm:$0xff] %v436
    %469 = vst [vmem:[#allocation2 + $0xf8] sm:$0xff] %v437
    %s470 = smul.u32 0, 4
    %s471 = smul.addr %s470, 8
    %s472 = scalar_lea.vmem [#allocation2], %s471
    %v473 = vld [vmem:[%s472] sm:$0xff]
    %v474 = vld [vmem:[%s472 + $0x8] sm:$0xff]
    %v475 = vld [vmem:[%s472 + $0x10] sm:$0xff]
    %v476 = vld [vmem:[%s472 + $0x18] sm:$0xff]
    %v477 = vunpack.c.l.bf16 %v473
    %v478 = vunpack.c.l.bf16 %v474
    %v479 = vunpack.c.l.bf16 %v475
    %v480 = vunpack.c.l.bf16 %v476
    %v481 = vunpack.c.h.bf16 %v473
    %v482 = vunpack.c.h.bf16 %v474
    %v483 = vunpack.c.h.bf16 %v475
    %v484 = vunpack.c.h.bf16 %v476
    %v485 = vld [vmem:[#allocation6] sm:$0xff]
    %v486 = vld [vmem:[#allocation6 + $0x8] sm:$0xff]
    %v487 = vld [vmem:[#allocation6 + $0x10] sm:$0xff]
    %v488 = vld [vmem:[#allocation6 + $0x18] sm:$0xff]
    %v489 = vld [vmem:[#allocation6 + $0x20] sm:$0xff]
    %v490 = vld [vmem:[#allocation6 + $0x28] sm:$0xff]
    %v491 = vld [vmem:[#allocation6 + $0x30] sm:$0xff]
    %v492 = vld [vmem:[#allocation6 + $0x38] sm:$0xff]
    %v493 = vld [vmem:[#allocation6 + $0x40] sm:$0xff]
    %v494 = vld [vmem:[#allocation6 + $0x48] sm:$0xff]
    %v495 = vld [vmem:[#allocation6 + $0x50] sm:$0xff]
    %v496 = vld [vmem:[#allocation6 + $0x58] sm:$0xff]
    %v497 = vld [vmem:[#allocation6 + $0x60] sm:$0xff]
    %v498 = vld [vmem:[#allocation6 + $0x68] sm:$0xff]
    %v499 = vld [vmem:[#allocation6 + $0x70] sm:$0xff]
    %v500 = vld [vmem:[#allocation6 + $0x78] sm:$0xff]
    %v501 = vld [vmem:[#allocation6 + $0x80] sm:$0xff]
    %v502 = vld [vmem:[#allocation6 + $0x88] sm:$0xff]
    %v503 = vld [vmem:[#allocation6 + $0x90] sm:$0xff]
    %v504 = vld [vmem:[#allocation6 + $0x98] sm:$0xff]
    %v505 = vld [vmem:[#allocation6 + $0xa0] sm:$0xff]
    %v506 = vld [vmem:[#allocation6 + $0xa8] sm:$0xff]
    %v507 = vld [vmem:[#allocation6 + $0xb0] sm:$0xff]
    %v508 = vld [vmem:[#allocation6 + $0xb8] sm:$0xff]
    %v509 = vld [vmem:[#allocation6 + $0xc0] sm:$0xff]
    %v510 = vld [vmem:[#allocation6 + $0xc8] sm:$0xff]
    %v511 = vld [vmem:[#allocation6 + $0xd0] sm:$0xff]
    %v512 = vld [vmem:[#allocation6 + $0xd8] sm:$0xff]
    %v513 = vld [vmem:[#allocation6 + $0xe0] sm:$0xff]
    %v514 = vld [vmem:[#allocation6 + $0xe8] sm:$0xff]
    %v515 = vld [vmem:[#allocation6 + $0xf0] sm:$0xff]
    %v516 = vld [vmem:[#allocation6 + $0xf8] sm:$0xff]
    %v549 = vunpack.c.l.b16 %v485
    %v550 = vunpack.c.h.b16 %v485
    %v551 = vunpack.c.l.b16 %v486
    %v552 = vunpack.c.h.b16 %v486
    %v553 = vunpack.c.l.b16 %v487
    %v554 = vunpack.c.h.b16 %v487
    %v555 = vunpack.c.l.b16 %v488
    %v556 = vunpack.c.h.b16 %v488
    %v557 = vunpack.c.l.b16 %v489
    %v558 = vunpack.c.h.b16 %v489
    %v559 = vunpack.c.l.b16 %v490
    %v560 = vunpack.c.h.b16 %v490
    %v561 = vunpack.c.l.b16 %v491
    %v562 = vunpack.c.h.b16 %v491
    %v563 = vunpack.c.l.b16 %v492
    %v564 = vunpack.c.h.b16 %v492
    %v565 = vunpack.c.l.b16 %v493
    %v566 = vunpack.c.h.b16 %v493
    %v567 = vunpack.c.l.b16 %v494
    %v568 = vunpack.c.h.b16 %v494
    %v569 = vunpack.c.l.b16 %v495
    %v570 = vunpack.c.h.b16 %v495
    %v571 = vunpack.c.l.b16 %v496
    %v572 = vunpack.c.h.b16 %v496
    %v573 = vunpack.c.l.b16 %v497
    %v574 = vunpack.c.h.b16 %v497
    %v575 = vunpack.c.l.b16 %v498
    %v576 = vunpack.c.h.b16 %v498
    %v577 = vunpack.c.l.b16 %v499
    %v578 = vunpack.c.h.b16 %v499
    %v579 = vunpack.c.l.b16 %v500
    %v580 = vunpack.c.h.b16 %v500
    %v581 = vunpack.c.l.b16 %v501
    %v582 = vunpack.c.h.b16 %v501
    %v583 = vunpack.c.l.b16 %v502
    %v584 = vunpack.c.h.b16 %v502
    %v585 = vunpack.c.l.b16 %v503
    %v586 = vunpack.c.h.b16 %v503
    %v587 = vunpack.c.l.b16 %v504
    %v588 = vunpack.c.h.b16 %v504
    %v589 = vunpack.c.l.b16 %v505
    %v590 = vunpack.c.h.b16 %v505
    %v591 = vunpack.c.l.b16 %v506
    %v592 = vunpack.c.h.b16 %v506
    %v593 = vunpack.c.l.b16 %v507
    %v594 = vunpack.c.h.b16 %v507
    %v595 = vunpack.c.l.b16 %v508
    %v596 = vunpack.c.h.b16 %v508
    %v597 = vunpack.c.l.b16 %v509
    %v598 = vunpack.c.h.b16 %v509
    %v599 = vunpack.c.l.b16 %v510
    %v600 = vunpack.c.h.b16 %v510
    %v601 = vunpack.c.l.b16 %v511
    %v602 = vunpack.c.h.b16 %v511
    %v603 = vunpack.c.l.b16 %v512
    %v604 = vunpack.c.h.b16 %v512
    %v605 = vunpack.c.l.b16 %v513
    %v606 = vunpack.c.h.b16 %v513
    %v607 = vunpack.c.l.b16 %v514
    %v608 = vunpack.c.h.b16 %v514
    %v609 = vunpack.c.l.b16 %v515
    %v610 = vunpack.c.h.b16 %v515
    %v611 = vunpack.c.l.b16 %v516
    %v612 = vunpack.c.h.b16 %v516
    %v613 = vpack.c.b16 %v553, %v549
    %v614 = vpack.c.b16 %v554, %v550
    %v615 = vpack.c.b16 %v555, %v551
    %v616 = vpack.c.b16 %v556, %v552
    %v617 = vpack.c.b16 %v561, %v557
    %v618 = vpack.c.b16 %v562, %v558
    %v619 = vpack.c.b16 %v563, %v559
    %v620 = vpack.c.b16 %v564, %v560
    %v621 = vpack.c.b16 %v569, %v565
    %v622 = vpack.c.b16 %v570, %v566
    %v623 = vpack.c.b16 %v571, %v567
    %v624 = vpack.c.b16 %v572, %v568
    %v625 = vpack.c.b16 %v577, %v573
    %v626 = vpack.c.b16 %v578, %v574
    %v627 = vpack.c.b16 %v579, %v575
    %v628 = vpack.c.b16 %v580, %v576
    %v629 = vpack.c.b16 %v585, %v581
    %v630 = vpack.c.b16 %v586, %v582
    %v631 = vpack.c.b16 %v587, %v583
    %v632 = vpack.c.b16 %v588, %v584
    %v633 = vpack.c.b16 %v593, %v589
    %v634 = vpack.c.b16 %v594, %v590
    %v635 = vpack.c.b16 %v595, %v591
    %v636 = vpack.c.b16 %v596, %v592
    %v637 = vpack.c.b16 %v601, %v597
    %v638 = vpack.c.b16 %v602, %v598
    %v639 = vpack.c.b16 %v603, %v599
    %v640 = vpack.c.b16 %v604, %v600
    %v641 = vpack.c.b16 %v609, %v605
    %v642 = vpack.c.b16 %v610, %v606
    %v643 = vpack.c.b16 %v611, %v607
    %v644 = vpack.c.b16 %v612, %v608
    %677 = vmatprep.subr.bf16.mxu0 %v614
    %678 = vmatpush1.bf16.msra.mxu0 %v613
    %679 = vmatprep.subr.bf16.mxu0 %v618
    %680 = vmatpush1.bf16.msra.mxu0 %v617
    %681 = vmatprep.subr.bf16.mxu0 %v622
    %682 = vmatpush1.bf16.msra.mxu0 %v621
    %683 = vmatprep.subr.bf16.mxu0 %v626
    %684 = vmatpush1.bf16.msra.mxu0 %v625
    %685 = vmatprep.subr.bf16.mxu0 %v630
    %686 = vmatpush1.bf16.msra.mxu0 %v629
    %687 = vmatprep.subr.bf16.mxu0 %v634
    %688 = vmatpush1.bf16.msra.mxu0 %v633
    %689 = vmatprep.subr.bf16.mxu0 %v638
    %690 = vmatpush1.bf16.msra.mxu0 %v637
    %691 = vmatprep.subr.bf16.mxu0 %v642
    %692 = vmatpush1.bf16.msra.mxu0 %v641
    %693 = vmatprep.subr.bf16.mxu0 0
    %694 = vmatpush1.bf16.msra.mxu0 0
    %695 = vmatprep.subr.bf16.mxu0 0
    %696 = vmatpush1.bf16.msra.mxu0 0
    %697 = vmatprep.subr.bf16.mxu0 0
    %698 = vmatpush1.bf16.msra.mxu0 0
    %699 = vmatprep.subr.bf16.mxu0 0
    %700 = vmatpush1.bf16.msra.mxu0 0
    %701 = vmatprep.subr.bf16.mxu0 0
    %702 = vmatpush1.bf16.msra.mxu0 0
    %703 = vmatprep.subr.bf16.mxu0 0
    %704 = vmatpush1.bf16.msra.mxu0 0
    %705 = vmatprep.subr.bf16.mxu0 0
    %706 = vmatpush1.bf16.msra.mxu0 0
    %707 = vmatprep.subr.bf16.mxu0 0
    %708 = vmatpush1.bf16.msra.mxu0 0
    %709 = vmatprep.mubr.bf16.mxu0 0
    %710 = vmatmul.mubr.bf16.gmra.mrb[0].mxu0 0
    %v711 = vpop.f32.mrb[0].mxu0
    %v712 = vadd.f32 0.0, %v711
    %v713 = vpop.f32.mrb[0].mxu0
    %v714 = vadd.f32 0.0, %v713
    %v715 = vpop.f32.mrb[0].mxu0
    %v716 = vadd.f32 0.0, %v715
    %v717 = vpop.f32.mrb[0].mxu0
    %v718 = vadd.f32 0.0, %v717
    %719 = vdwg.mxu0
    %720 = vmatprep.subr.bf16.mxu0 %v616
    %721 = vmatpush1.bf16.msra.mxu0 %v615
    %722 = vmatprep.subr.bf16.mxu0 %v620
    %723 = vmatpush1.bf16.msra.mxu0 %v619
    %724 = vmatprep.subr.bf16.mxu0 %v624
    %725 = vmatpush1.bf16.msra.mxu0 %v623
    %726 = vmatprep.subr.bf16.mxu0 %v628
    %727 = vmatpush1.bf16.msra.mxu0 %v627
    %728 = vmatprep.subr.bf16.mxu0 %v632
    %729 = vmatpush1.bf16.msra.mxu0 %v631
    %730 = vmatprep.subr.bf16.mxu0 %v636
    %731 = vmatpush1.bf16.msra.mxu0 %v635
    %732 = vmatprep.subr.bf16.mxu0 %v640
    %733 = vmatpush1.bf16.msra.mxu0 %v639
    %734 = vmatprep.subr.bf16.mxu0 %v644
    %735 = vmatpush1.bf16.msra.mxu0 %v643
    %736 = vmatprep.subr.bf16.mxu0 0
    %737 = vmatpush1.bf16.msra.mxu0 0
    %738 = vmatprep.subr.bf16.mxu0 0
    %739 = vmatpush1.bf16.msra.mxu0 0
    %740 = vmatprep.subr.bf16.mxu0 0
    %741 = vmatpush1.bf16.msra.mxu0 0
    %742 = vmatprep.subr.bf16.mxu0 0
    %743 = vmatpush1.bf16.msra.mxu0 0
    %744 = vmatprep.subr.bf16.mxu0 0
    %745 = vmatpush1.bf16.msra.mxu0 0
    %746 = vmatprep.subr.bf16.mxu0 0
    %747 = vmatpush1.bf16.msra.mxu0 0
    %748 = vmatprep.subr.bf16.mxu0 0
    %749 = vmatpush1.bf16.msra.mxu0 0
    %750 = vmatprep.subr.bf16.mxu0 0
    %751 = vmatpush1.bf16.msra.mxu0 0
    %752 = vmatprep.mubr.bf16.mxu0 0
    %753 = vmatmul.mubr.bf16.gmra.mrb[0].mxu0 0
    %v754 = vpop.f32.mrb[0].mxu0
    %v755 = vadd.f32 0.0, %v754
    %v756 = vpop.f32.mrb[0].mxu0
    %v757 = vadd.f32 0.0, %v756
    %v758 = vpop.f32.mrb[0].mxu0
    %v759 = vadd.f32 0.0, %v758
    %v760 = vpop.f32.mrb[0].mxu0
    %v761 = vadd.f32 0.0, %v760
    %762 = vdwg.mxu0
    %v763 = vadd.f32 %v477, %v712
    %v764 = vadd.f32 %v478, %v714
    %v765 = vadd.f32 %v479, %v755
    %v766 = vadd.f32 %v480, %v757
    %v767 = vadd.f32 %v481, %v716
    %v768 = vadd.f32 %v482, %v718
    %v769 = vadd.f32 %v483, %v759
    %v770 = vadd.f32 %v484, %v761
    %v771 = vmul.f32 %v763, 0.5
    %v772 = vmul.f32 %v767, 0.5
    %v773 = vtanh.pop %v771
    %v774 = vtanh.pop %v772
    %v775 = vmul.f32 %v773, 0.5
    %v776 = vmul.f32 %v774, 0.5
    %v777 = vadd.f32 %v775, 0.5
    %v778 = vadd.f32 %v776, 0.5
    %v779 = vmul.f32 %v764, 0.5
    %v780 = vmul.f32 %v768, 0.5
    %v781 = vtanh.pop %v779
    %v782 = vtanh.pop %v780
    %v783 = vmul.f32 %v781, 0.5
    %v784 = vmul.f32 %v782, 0.5
    %v785 = vadd.f32 %v783, 0.5
    %v786 = vadd.f32 %v784, 0.5
    %v787 = vtanh.pop %v765
    %v788 = vtanh.pop %v769
    %v789 = vmul.f32 %v766, 0.5
    %v790 = vmul.f32 %v770, 0.5
    %v791 = vtanh.pop %v789
    %v792 = vtanh.pop %v790
    %v793 = vmul.f32 %v791, 0.5
    %v794 = vmul.f32 %v792, 0.5
    %v795 = vadd.f32 %v793, 0.5
    %v796 = vadd.f32 %v794, 0.5
    %v797 = vmul.f32 %v785, 0.0
    %v798 = vmul.f32 %v786, 0.0
    %v799 = vmul.f32 %v777, %v787
    %v800 = vmul.f32 %v778, %v788
    %v801 = vadd.f32 %v797, %v799
    %v802 = vadd.f32 %v798, %v800
    %v803 = vtanh.pop %v801
    %v804 = vtanh.pop %v802
    %v805 = vmul.f32 %v795, %v803
    %v806 = vmul.f32 %v796, %v804
    %s807 = smul.u32 1, 4
    %s808 = smul.addr %s807, 8
    %s809 = scalar_lea.vmem [#allocation2], %s808
    %v810 = vld [vmem:[%s809] sm:$0xff]
    %v811 = vld [vmem:[%s809 + $0x8] sm:$0xff]
    %v812 = vld [vmem:[%s809 + $0x10] sm:$0xff]
    %v813 = vld [vmem:[%s809 + $0x18] sm:$0xff]
    %v814 = vunpack.c.l.bf16 %v810
    %v815 = vunpack.c.l.bf16 %v811
    %v816 = vunpack.c.l.bf16 %v812
    %v817 = vunpack.c.l.bf16 %v813
    %v818 = vunpack.c.h.bf16 %v810
    %v819 = vunpack.c.h.bf16 %v811
    %v820 = vunpack.c.h.bf16 %v812
    %v821 = vunpack.c.h.bf16 %v813
    %v822 = vpack.c.bf16 %v806, %v805
    %823 = vmatprep.subr.bf16.mxu0 %v614
    %824 = vmatpush1.bf16.msra.mxu0 %v613
    %825 = vmatprep.subr.bf16.mxu0 %v618
    %826 = vmatpush1.bf16.msra.mxu0 %v617
    %827 = vmatprep.subr.bf16.mxu0 %v622
    %828 = vmatpush1.bf16.msra.mxu0 %v621
    %829 = vmatprep.subr.bf16.mxu0 %v626
    %830 = vmatpush1.bf16.msra.mxu0 %v625
    %831 = vmatprep.subr.bf16.mxu0 %v630
    %832 = vmatpush1.bf16.msra.mxu0 %v629
    %833 = vmatprep.subr.bf16.mxu0 %v634
    %834 = vmatpush1.bf16.msra.mxu0 %v633
    %835 = vmatprep.subr.bf16.mxu0 %v638
    %836 = vmatpush1.bf16.msra.mxu0 %v637
    %837 = vmatprep.subr.bf16.mxu0 %v642
    %838 = vmatpush1.bf16.msra.mxu0 %v641
    %839 = vmatprep.subr.bf16.mxu0 0
    %840 = vmatpush1.bf16.msra.mxu0 0
    %841 = vmatprep.subr.bf16.mxu0 0
    %842 = vmatpush1.bf16.msra.mxu0 0
    %843 = vmatprep.subr.bf16.mxu0 0
    %844 = vmatpush1.bf16.msra.mxu0 0
    %845 = vmatprep.subr.bf16.mxu0 0
    %846 = vmatpush1.bf16.msra.mxu0 0
    %847 = vmatprep.subr.bf16.mxu0 0
    %848 = vmatpush1.bf16.msra.mxu0 0
    %849 = vmatprep.subr.bf16.mxu0 0
    %850 = vmatpush1.bf16.msra.mxu0 0
    %851 = vmatprep.subr.bf16.mxu0 0
    %852 = vmatpush1.bf16.msra.mxu0 0
    %853 = vmatprep.subr.bf16.mxu0 0
    %854 = vmatpush1.bf16.msra.mxu0 0
    %855 = vmatprep.mubr.bf16.mxu0 0
    %856 = vmatmul.mubr.bf16.gmra.mrb[0].mxu0 %v822
    %v857 = vpop.f32.mrb[0].mxu0
    %v858 = vadd.f32 0.0, %v857
    %v859 = vpop.f32.mrb[0].mxu0
    %v860 = vadd.f32 0.0, %v859
    %v861 = vpop.f32.mrb[0].mxu0
    %v862 = vadd.f32 0.0, %v861
    %v863 = vpop.f32.mrb[0].mxu0
    %v864 = vadd.f32 0.0, %v863
    %865 = vdwg.mxu0
    %866 = vmatprep.subr.bf16.mxu0 %v616
    %867 = vmatpush1.bf16.msra.mxu0 %v615
    %868 = vmatprep.subr.bf16.mxu0 %v620
    %869 = vmatpush1.bf16.msra.mxu0 %v619
    %870 = vmatprep.subr.bf16.mxu0 %v624
    %871 = vmatpush1.bf16.msra.mxu0 %v623
    %872 = vmatprep.subr.bf16.mxu0 %v628
    %873 = vmatpush1.bf16.msra.mxu0 %v627
    %874 = vmatprep.subr.bf16.mxu0 %v632
    %875 = vmatpush1.bf16.msra.mxu0 %v631
    %876 = vmatprep.subr.bf16.mxu0 %v636
    %877 = vmatpush1.bf16.msra.mxu0 %v635
    %878 = vmatprep.subr.bf16.mxu0 %v640
    %879 = vmatpush1.bf16.msra.mxu0 %v639
    %880 = vmatprep.subr.bf16.mxu0 %v644
    %881 = vmatpush1.bf16.msra.mxu0 %v643
    %882 = vmatprep.subr.bf16.mxu0 0
    %883 = vmatpush1.bf16.msra.mxu0 0
    %884 = vmatprep.subr.bf16.mxu0 0
    %885 = vmatpush1.bf16.msra.mxu0 0
    %886 = vmatprep.subr.bf16.mxu0 0
    %887 = vmatpush1.bf16.msra.mxu0 0
    %888 = vmatprep.subr.bf16.mxu0 0
    %889 = vmatpush1.bf16.msra.mxu0 0
    %890 = vmatprep.subr.bf16.mxu0 0
    %891 = vmatpush1.bf16.msra.mxu0 0
    %892 = vmatprep.subr.bf16.mxu0 0
    %893 = vmatpush1.bf16.msra.mxu0 0
    %894 = vmatprep.subr.bf16.mxu0 0
    %895 = vmatpush1.bf16.msra.mxu0 0
    %896 = vmatprep.subr.bf16.mxu0 0
    %897 = vmatpush1.bf16.msra.mxu0 0
    %898 = vmatprep.mubr.bf16.mxu0 0
    %899 = vmatmul.mubr.bf16.gmra.mrb[0].mxu0 %v822
    %v900 = vpop.f32.mrb[0].mxu0
    %v901 = vadd.f32 0.0, %v900
    %v902 = vpop.f32.mrb[0].mxu0
    %v903 = vadd.f32 0.0, %v902
    %v904 = vpop.f32.mrb[0].mxu0
    %v905 = vadd.f32 0.0, %v904
    %v906 = vpop.f32.mrb[0].mxu0
    %v907 = vadd.f32 0.0, %v906
    %908 = vdwg.mxu0
    %v909 = vadd.f32 %v814, %v858
    %v910 = vadd.f32 %v815, %v860
    %v911 = vadd.f32 %v816, %v901
    %v912 = vadd.f32 %v817, %v903
    %v913 = vadd.f32 %v818, %v862
    %v914 = vadd.f32 %v819, %v864
    %v915 = vadd.f32 %v820, %v905
    %v916 = vadd.f32 %v821, %v907
    %v917 = vmul.f32 %v909, 0.5
    %v918 = vmul.f32 %v913, 0.5
    %v919 = vtanh.pop %v917
    %v920 = vtanh.pop %v918
    %v921 = vmul.f32 %v919, 0.5
    %v922 = vmul.f32 %v920, 0.5
    %v923 = vadd.f32 %v921, 0.5
    %v924 = vadd.f32 %v922, 0.5
    %v925 = vmul.f32 %v910, 0.5
    %v926 = vmul.f32 %v914, 0.5
    %v927 = vtanh.pop %v925
    %v928 = vtanh.pop %v926
    %v929 = vmul.f32 %v927, 0.5
    %v930 = vmul.f32 %v928, 0.5
    %v931 = vadd.f32 %v929, 0.5
    %v932 = vadd.f32 %v930, 0.5
    %v933 = vtanh.pop %v911
    %v934 = vtanh.pop %v915
    %v935 = vmul.f32 %v912, 0.5
    %v936 = vmul.f32 %v916, 0.5
    %v937 = vtanh.pop %v935
    %v938 = vtanh.pop %v936
    %v939 = vmul.f32 %v937, 0.5
    %v940 = vmul.f32 %v938, 0.5
    %v941 = vadd.f32 %v939, 0.5
    %v942 = vadd.f32 %v940, 0.5
    %v943 = vmul.f32 %v931, %v801
    %v944 = vmul.f32 %v932, %v802
    %v945 = vmul.f32 %v923, %v933
    %v946 = vmul.f32 %v924, %v934
    %v947 = vadd.f32 %v943, %v945
    %v948 = vadd.f32 %v944, %v946
    %v949 = vtanh.pop %v947
    %v950 = vtanh.pop %v948
    %v951 = vmul.f32 %v941, %v949
    %v952 = vmul.f32 %v942, %v950
    %s953 = smul.u32 2, 4
    %s954 = smul.addr %s953, 8
    %s955 = scalar_lea.vmem [#allocation2], %s954
    %v956 = vld [vmem:[%s955] sm:$0xff]
    %v957 = vld [vmem:[%s955 + $0x8] sm:$0xff]
    %v958 = vld [vmem:[%s955 + $0x10] sm:$0xff]
    %v959 = vld [vmem:[%s955 + $0x18] sm:$0xff]
    %v960 = vunpack.c.l.bf16 %v956
    %v961 = vunpack.c.l.bf16 %v957
    %v962 = vunpack.c.l.bf16 %v958
    %v963 = vunpack.c.l.bf16 %v959
    %v964 = vunpack.c.h.bf16 %v956
    %v965 = vunpack.c.h.bf16 %v957
    %v966 = vunpack.c.h.bf16 %v958
    %v967 = vunpack.c.h.bf16 %v959
    %v968 = vpack.c.bf16 %v952, %v951
    %969 = vmatprep.subr.bf16.mxu0 %v614
    %970 = vmatpush1.bf16.msra.mxu0 %v613
    %971 = vmatprep.subr.bf16.mxu0 %v618
    %972 = vmatpush1.bf16.msra.mxu0 %v617
    %973 = vmatprep.subr.bf16.mxu0 %v622
    %974 = vmatpush1.bf16.msra.mxu0 %v621
    %975 = vmatprep.subr.bf16.mxu0 %v626
    %976 = vmatpush1.bf16.msra.mxu0 %v625
    %977 = vmatprep.subr.bf16.mxu0 %v630
    %978 = vmatpush1.bf16.msra.mxu0 %v629
    %979 = vmatprep.subr.bf16.mxu0 %v634
    %980 = vmatpush1.bf16.msra.mxu0 %v633
    %981 = vmatprep.subr.bf16.mxu0 %v638
    %982 = vmatpush1.bf16.msra.mxu0 %v637
    %983 = vmatprep.subr.bf16.mxu0 %v642
    %984 = vmatpush1.bf16.msra.mxu0 %v641
    %985 = vmatprep.subr.bf16.mxu0 0
    %986 = vmatpush1.bf16.msra.mxu0 0
    %987 = vmatprep.subr.bf16.mxu0 0
    %988 = vmatpush1.bf16.msra.mxu0 0
    %989 = vmatprep.subr.bf16.mxu0 0
    %990 = vmatpush1.bf16.msra.mxu0 0
    %991 = vmatprep.subr.bf16.mxu0 0
    %992 = vmatpush1.bf16.msra.mxu0 0
    %993 = vmatprep.subr.bf16.mxu0 0
    %994 = vmatpush1.bf16.msra.mxu0 0
    %995 = vmatprep.subr.bf16.mxu0 0
    %996 = vmatpush1.bf16.msra.mxu0 0
    %997 = vmatprep.subr.bf16.mxu0 0
    %998 = vmatpush1.bf16.msra.mxu0 0
    %999 = vmatprep.subr.bf16.mxu0 0
    %1000 = vmatpush1.bf16.msra.mxu0 0
    %1001 = vmatprep.mubr.bf16.mxu0 0
    %1002 = vmatmul.mubr.bf16.gmra.mrb[0].mxu0 %v968
    %v1003 = vpop.f32.mrb[0].mxu0
    %v1004 = vadd.f32 0.0, %v1003
    %v1005 = vpop.f32.mrb[0].mxu0
    %v1006 = vadd.f32 0.0, %v1005
    %v1007 = vpop.f32.mrb[0].mxu0
    %v1008 = vadd.f32 0.0, %v1007
    %v1009 = vpop.f32.mrb[0].mxu0
    %v1010 = vadd.f32 0.0, %v1009
    %1011 = vdwg.mxu0
    %1012 = vmatprep.subr.bf16.mxu0 %v616
    %1013 = vmatpush1.bf16.msra.mxu0 %v615
    %1014 = vmatprep.subr.bf16.mxu0 %v620
    %1015 = vmatpush1.bf16.msra.mxu0 %v619
    %1016 = vmatprep.subr.bf16.mxu0 %v624
    %1017 = vmatpush1.bf16.msra.mxu0 %v623
    %1018 = vmatprep.subr.bf16.mxu0 %v628
    %1019 = vmatpush1.bf16.msra.mxu0 %v627
    %1020 = vmatprep.subr.bf16.mxu0 %v632
    %1021 = vmatpush1.bf16.msra.mxu0 %v631
    %1022 = vmatprep.subr.bf16.mxu0 %v636
    %1023 = vmatpush1.bf16.msra.mxu0 %v635
    %1024 = vmatprep.subr.bf16.mxu0 %v640
    %1025 = vmatpush1.bf16.msra.mxu0 %v639
    %1026 = vmatprep.subr.bf16.mxu0 %v644
    %1027 = vmatpush1.bf16.msra.mxu0 %v643
    %1028 = vmatprep.subr.bf16.mxu0 0
    %1029 = vmatpush1.bf16.msra.mxu0 0
    %1030 = vmatprep.subr.bf16.mxu0 0
    %1031 = vmatpush1.bf16.msra.mxu0 0
    %1032 = vmatprep.subr.bf16.mxu0 0
    %1033 = vmatpush1.bf16.msra.mxu0 0
    %1034 = vmatprep.subr.bf16.mxu0 0
    %1035 = vmatpush1.bf16.msra.mxu0 0
    %1036 = vmatprep.subr.bf16.mxu0 0
    %1037 = vmatpush1.bf16.msra.mxu0 0
    %1038 = vmatprep.subr.bf16.mxu0 0
    %1039 = vmatpush1.bf16.msra.mxu0 0
    %1040 = vmatprep.subr.bf16.mxu0 0
    %1041 = vmatpush1.bf16.msra.mxu0 0
    %1042 = vmatprep.subr.bf16.mxu0 0
    %1043 = vmatpush1.bf16.msra.mxu0 0
    %1044 = vmatprep.mubr.bf16.mxu0 0
    %1045 = vmatmul.mubr.bf16.gmra.mrb[0].mxu0 %v968
    %v1046 = vpop.f32.mrb[0].mxu0
    %v1047 = vadd.f32 0.0, %v1046
    %v1048 = vpop.f32.mrb[0].mxu0
    %v1049 = vadd.f32 0.0, %v1048
    %v1050 = vpop.f32.mrb[0].mxu0
    %v1051 = vadd.f32 0.0, %v1050
    %v1052 = vpop.f32.mrb[0].mxu0
    %v1053 = vadd.f32 0.0, %v1052
    %1054 = vdwg.mxu0
    %v1055 = vadd.f32 %v960, %v1004
    %v1056 = vadd.f32 %v961, %v1006
    %v1057 = vadd.f32 %v962, %v1047
    %v1058 = vadd.f32 %v963, %v1049
    %v1059 = vadd.f32 %v964, %v1008
    %v1060 = vadd.f32 %v965, %v1010
    %v1061 = vadd.f32 %v966, %v1051
    %v1062 = vadd.f32 %v967, %v1053
    %v1063 = vmul.f32 %v1055, 0.5
    %v1064 = vmul.f32 %v1059, 0.5
    %v1065 = vtanh.pop %v1063
    %v1066 = vtanh.pop %v1064
    %v1067 = vmul.f32 %v1065, 0.5
    %v1068 = vmul.f32 %v1066, 0.5
    %v1069 = vadd.f32 %v1067, 0.5
    %v1070 = vadd.f32 %v1068, 0.5
    %v1071 = vmul.f32 %v1056, 0.5
    %v1072 = vmul.f32 %v1060, 0.5
    %v1073 = vtanh.pop %v1071
    %v1074 = vtanh.pop %v1072
    %v1075 = vmul.f32 %v1073, 0.5
    %v1076 = vmul.f32 %v1074, 0.5
    %v1077 = vadd.f32 %v1075, 0.5
    %v1078 = vadd.f32 %v1076, 0.5
    %v1079 = vtanh.pop %v1057
    %v1080 = vtanh.pop %v1061
    %v1081 = vmul.f32 %v1058, 0.5
    %v1082 = vmul.f32 %v1062, 0.5
    %v1083 = vtanh.pop %v1081
    %v1084 = vtanh.pop %v1082
    %v1085 = vmul.f32 %v1083, 0.5
    %v1086 = vmul.f32 %v1084, 0.5
    %v1087 = vadd.f32 %v1085, 0.5
    %v1088 = vadd.f32 %v1086, 0.5
    %v1089 = vmul.f32 %v1077, %v947
    %v1090 = vmul.f32 %v1078, %v948
    %v1091 = vmul.f32 %v1069, %v1079
    %v1092 = vmul.f32 %v1070, %v1080
    %v1093 = vadd.f32 %v1089, %v1091
    %v1094 = vadd.f32 %v1090, %v1092
    %v1095 = vtanh.pop %v1093
    %v1096 = vtanh.pop %v1094
    %v1097 = vmul.f32 %v1087, %v1095
    %v1098 = vmul.f32 %v1088, %v1096
    %s1099 = smul.u32 3, 4
    %s1100 = smul.addr %s1099, 8
    %s1101 = scalar_lea.vmem [#allocation2], %s1100
    %v1102 = vld [vmem:[%s1101] sm:$0xff]
    %v1103 = vld [vmem:[%s1101 + $0x8] sm:$0xff]
    %v1104 = vld [vmem:[%s1101 + $0x10] sm:$0xff]
    %v1105 = vld [vmem:[%s1101 + $0x18] sm:$0xff]
    %v1106 = vunpack.c.l.bf16 %v1102
    %v1107 = vunpack.c.l.bf16 %v1103
    %v1108 = vunpack.c.l.bf16 %v1104
    %v1109 = vunpack.c.l.bf16 %v1105
    %v1110 = vunpack.c.h.bf16 %v1102
    %v1111 = vunpack.c.h.bf16 %v1103
    %v1112 = vunpack.c.h.bf16 %v1104
    %v1113 = vunpack.c.h.bf16 %v1105
    %v1114 = vpack.c.bf16 %v1098, %v1097
    %1115 = vmatprep.subr.bf16.mxu0 %v614
    %1116 = vmatpush1.bf16.msra.mxu0 %v613
    %1117 = vmatprep.subr.bf16.mxu0 %v618
    %1118 = vmatpush1.bf16.msra.mxu0 %v617
    %1119 = vmatprep.subr.bf16.mxu0 %v622
    %1120 = vmatpush1.bf16.msra.mxu0 %v621
    %1121 = vmatprep.subr.bf16.mxu0 %v626
    %1122 = vmatpush1.bf16.msra.mxu0 %v625
    %1123 = vmatprep.subr.bf16.mxu0 %v630
    %1124 = vmatpush1.bf16.msra.mxu0 %v629
    %1125 = vmatprep.subr.bf16.mxu0 %v634
    %1126 = vmatpush1.bf16.msra.mxu0 %v633
    %1127 = vmatprep.subr.bf16.mxu0 %v638
    %1128 = vmatpush1.bf16.msra.mxu0 %v637
    %1129 = vmatprep.subr.bf16.mxu0 %v642
    %1130 = vmatpush1.bf16.msra.mxu0 %v641
    %1131 = vmatprep.subr.bf16.mxu0 0
    %1132 = vmatpush1.bf16.msra.mxu0 0
    %1133 = vmatprep.subr.bf16.mxu0 0
    %1134 = vmatpush1.bf16.msra.mxu0 0
    %1135 = vmatprep.subr.bf16.mxu0 0
    %1136 = vmatpush1.bf16.msra.mxu0 0
    %1137 = vmatprep.subr.bf16.mxu0 0
    %1138 = vmatpush1.bf16.msra.mxu0 0
    %1139 = vmatprep.subr.bf16.mxu0 0
    %1140 = vmatpush1.bf16.msra.mxu0 0
    %1141 = vmatprep.subr.bf16.mxu0 0
    %1142 = vmatpush1.bf16.msra.mxu0 0
    %1143 = vmatprep.subr.bf16.mxu0 0
    %1144 = vmatpush1.bf16.msra.mxu0 0
    %1145 = vmatprep.subr.bf16.mxu0 0
    %1146 = vmatpush1.bf16.msra.mxu0 0
    %1147 = vmatprep.mubr.bf16.mxu0 0
    %1148 = vmatmul.mubr.bf16.gmra.mrb[0].mxu0 %v1114
    %v1149 = vpop.f32.mrb[0].mxu0
    %v1150 = vadd.f32 0.0, %v1149
    %v1151 = vpop.f32.mrb[0].mxu0
    %v1152 = vadd.f32 0.0, %v1151
    %v1153 = vpop.f32.mrb[0].mxu0
    %v1154 = vadd.f32 0.0, %v1153
    %v1155 = vpop.f32.mrb[0].mxu0
    %v1156 = vadd.f32 0.0, %v1155
    %1157 = vdwg.mxu0
    %1158 = vmatprep.subr.bf16.mxu0 %v616
    %1159 = vmatpush1.bf16.msra.mxu0 %v615
    %1160 = vmatprep.subr.bf16.mxu0 %v620
    %1161 = vmatpush1.bf16.msra.mxu0 %v619
    %1162 = vmatprep.subr.bf16.mxu0 %v624
    %1163 = vmatpush1.bf16.msra.mxu0 %v623
    %1164 = vmatprep.subr.bf16.mxu0 %v628
    %1165 = vmatpush1.bf16.msra.mxu0 %v627
    %1166 = vmatprep.subr.bf16.mxu0 %v632
    %1167 = vmatpush1.bf16.msra.mxu0 %v631
    %1168 = vmatprep.subr.bf16.mxu0 %v636
    %1169 = vmatpush1.bf16.msra.mxu0 %v635
    %1170 = vmatprep.subr.bf16.mxu0 %v640
    %1171 = vmatpush1.bf16.msra.mxu0 %v639
    %1172 = vmatprep.subr.bf16.mxu0 %v644
    %1173 = vmatpush1.bf16.msra.mxu0 %v643
    %1174 = vmatprep.subr.bf16.mxu0 0
    %1175 = vmatpush1.bf16.msra.mxu0 0
    %1176 = vmatprep.subr.bf16.mxu0 0
    %1177 = vmatpush1.bf16.msra.mxu0 0
    %1178 = vmatprep.subr.bf16.mxu0 0
    %1179 = vmatpush1.bf16.msra.mxu0 0
    %1180 = vmatprep.subr.bf16.mxu0 0
    %1181 = vmatpush1.bf16.msra.mxu0 0
    %1182 = vmatprep.subr.bf16.mxu0 0
    %1183 = vmatpush1.bf16.msra.mxu0 0
    %1184 = vmatprep.subr.bf16.mxu0 0
    %1185 = vmatpush1.bf16.msra.mxu0 0
    %1186 = vmatprep.subr.bf16.mxu0 0
    %1187 = vmatpush1.bf16.msra.mxu0 0
    %1188 = vmatprep.subr.bf16.mxu0 0
    %1189 = vmatpush1.bf16.msra.mxu0 0
    %1190 = vmatprep.mubr.bf16.mxu0 0
    %1191 = vmatmul.mubr.bf16.gmra.mrb[0].mxu0 %v1114
    %v1192 = vpop.f32.mrb[0].mxu0
    %v1193 = vadd.f32 0.0, %v1192
    %v1194 = vpop.f32.mrb[0].mxu0
    %v1195 = vadd.f32 0.0, %v1194
    %v1196 = vpop.f32.mrb[0].mxu0
    %v1197 = vadd.f32 0.0, %v1196
    %v1198 = vpop.f32.mrb[0].mxu0
    %v1199 = vadd.f32 0.0, %v1198
    %1200 = vdwg.mxu0
    %v1201 = vadd.f32 %v1106, %v1150
    %v1202 = vadd.f32 %v1107, %v1152
    %v1203 = vadd.f32 %v1108, %v1193
    %v1204 = vadd.f32 %v1109, %v1195
    %v1205 = vadd.f32 %v1110, %v1154
    %v1206 = vadd.f32 %v1111, %v1156
    %v1207 = vadd.f32 %v1112, %v1197
    %v1208 = vadd.f32 %v1113, %v1199
    %v1209 = vmul.f32 %v1201, 0.5
    %v1210 = vmul.f32 %v1205, 0.5
    %v1211 = vtanh.pop %v1209
    %v1212 = vtanh.pop %v1210
    %v1213 = vmul.f32 %v1211, 0.5
    %v1214 = vmul.f32 %v1212, 0.5
    %v1215 = vadd.f32 %v1213, 0.5
    %v1216 = vadd.f32 %v1214, 0.5
    %v1217 = vmul.f32 %v1202, 0.5
    %v1218 = vmul.f32 %v1206, 0.5
    %v1219 = vtanh.pop %v1217
    %v1220 = vtanh.pop %v1218
    %v1221 = vmul.f32 %v1219, 0.5
    %v1222 = vmul.f32 %v1220, 0.5
    %v1223 = vadd.f32 %v1221, 0.5
    %v1224 = vadd.f32 %v1222, 0.5
    %v1225 = vtanh.pop %v1203
    %v1226 = vtanh.pop %v1207
    %v1227 = vmul.f32 %v1204, 0.5
    %v1228 = vmul.f32 %v1208, 0.5
    %v1229 = vtanh.pop %v1227
    %v1230 = vtanh.pop %v1228
    %v1231 = vmul.f32 %v1229, 0.5
    %v1232 = vmul.f32 %v1230, 0.5
    %v1233 = vadd.f32 %v1231, 0.5
    %v1234 = vadd.f32 %v1232, 0.5
    %v1235 = vmul.f32 %v1223, %v1093
    %v1236 = vmul.f32 %v1224, %v1094
    %v1237 = vmul.f32 %v1215, %v1225
    %v1238 = vmul.f32 %v1216, %v1226
    %v1239 = vadd.f32 %v1235, %v1237
    %v1240 = vadd.f32 %v1236, %v1238
    %v1241 = vtanh.pop %v1239
    %v1242 = vtanh.pop %v1240
    %v1243 = vmul.f32 %v1233, %v1241
    %v1244 = vmul.f32 %v1234, %v1242
    %s1245 = smul.u32 4, 4
    %s1246 = smul.addr %s1245, 8
    %s1247 = scalar_lea.vmem [#allocation2], %s1246
    %v1248 = vld [vmem:[%s1247] sm:$0xff]
    %v1249 = vld [vmem:[%s1247 + $0x8] sm:$0xff]
    %v1250 = vld [vmem:[%s1247 + $0x10] sm:$0xff]
    %v1251 = vld [vmem:[%s1247 + $0x18] sm:$0xff]
    %v1252 = vunpack.c.l.bf16 %v1248
    %v1253 = vunpack.c.l.bf16 %v1249
    %v1254 = vunpack.c.l.bf16 %v1250
    %v1255 = vunpack.c.l.bf16 %v1251
    %v1256 = vunpack.c.h.bf16 %v1248
    %v1257 = vunpack.c.h.bf16 %v1249
    %v1258 = vunpack.c.h.bf16 %v1250
    %v1259 = vunpack.c.h.bf16 %v1251
    %v1260 = vpack.c.bf16 %v1244, %v1243
    %1261 = vmatprep.subr.bf16.mxu0 %v614
    %1262 = vmatpush1.bf16.msra.mxu0 %v613
    %1263 = vmatprep.subr.bf16.mxu0 %v618
    %1264 = vmatpush1.bf16.msra.mxu0 %v617
    %1265 = vmatprep.subr.bf16.mxu0 %v622
    %1266 = vmatpush1.bf16.msra.mxu0 %v621
    %1267 = vmatprep.subr.bf16.mxu0 %v626
    %1268 = vmatpush1.bf16.msra.mxu0 %v625
    %1269 = vmatprep.subr.bf16.mxu0 %v630
    %1270 = vmatpush1.bf16.msra.mxu0 %v629
    %1271 = vmatprep.subr.bf16.mxu0 %v634
    %1272 = vmatpush1.bf16.msra.mxu0 %v633
    %1273 = vmatprep.subr.bf16.mxu0 %v638
    %1274 = vmatpush1.bf16.msra.mxu0 %v637
    %1275 = vmatprep.subr.bf16.mxu0 %v642
    %1276 = vmatpush1.bf16.msra.mxu0 %v641
    %1277 = vmatprep.subr.bf16.mxu0 0
    %1278 = vmatpush1.bf16.msra.mxu0 0
    %1279 = vmatprep.subr.bf16.mxu0 0
    %1280 = vmatpush1.bf16.msra.mxu0 0
    %1281 = vmatprep.subr.bf16.mxu0 0
    %1282 = vmatpush1.bf16.msra.mxu0 0
    %1283 = vmatprep.subr.bf16.mxu0 0
    %1284 = vmatpush1.bf16.msra.mxu0 0
    %1285 = vmatprep.subr.bf16.mxu0 0
    %1286 = vmatpush1.bf16.msra.mxu0 0
    %1287 = vmatprep.subr.bf16.mxu0 0
    %1288 = vmatpush1.bf16.msra.mxu0 0
    %1289 = vmatprep.subr.bf16.mxu0 0
    %1290 = vmatpush1.bf16.msra.mxu0 0
    %1291 = vmatprep.subr.bf16.mxu0 0
    %1292 = vmatpush1.bf16.msra.mxu0 0
    %1293 = vmatprep.mubr.bf16.mxu0 0
    %1294 = vmatmul.mubr.bf16.gmra.mrb[0].mxu0 %v1260
    %v1295 = vpop.f32.mrb[0].mxu0
    %v1296 = vadd.f32 0.0, %v1295
    %v1297 = vpop.f32.mrb[0].mxu0
    %v1298 = vadd.f32 0.0, %v1297
    %v1299 = vpop.f32.mrb[0].mxu0
    %v1300 = vadd.f32 0.0, %v1299
    %v1301 = vpop.f32.mrb[0].mxu0
    %v1302 = vadd.f32 0.0, %v1301
    %1303 = vdwg.mxu0
    %1304 = vmatprep.subr.bf16.mxu0 %v616
    %1305 = vmatpush1.bf16.msra.mxu0 %v615
    %1306 = vmatprep.subr.bf16.mxu0 %v620
    %1307 = vmatpush1.bf16.msra.mxu0 %v619
    %1308 = vmatprep.subr.bf16.mxu0 %v624
    %1309 = vmatpush1.bf16.msra.mxu0 %v623
    %1310 = vmatprep.subr.bf16.mxu0 %v628
    %1311 = vmatpush1.bf16.msra.mxu0 %v627
    %1312 = vmatprep.subr.bf16.mxu0 %v632
    %1313 = vmatpush1.bf16.msra.mxu0 %v631
    %1314 = vmatprep.subr.bf16.mxu0 %v636
    %1315 = vmatpush1.bf16.msra.mxu0 %v635
    %1316 = vmatprep.subr.bf16.mxu0 %v640
    %1317 = vmatpush1.bf16.msra.mxu0 %v639
    %1318 = vmatprep.subr.bf16.mxu0 %v644
    %1319 = vmatpush1.bf16.msra.mxu0 %v643
    %1320 = vmatprep.subr.bf16.mxu0 0
    %1321 = vmatpush1.bf16.msra.mxu0 0
    %1322 = vmatprep.subr.bf16.mxu0 0
    %1323 = vmatpush1.bf16.msra.mxu0 0
    %1324 = vmatprep.subr.bf16.mxu0 0
    %1325 = vmatpush1.bf16.msra.mxu0 0
    %1326 = vmatprep.subr.bf16.mxu0 0
    %1327 = vmatpush1.bf16.msra.mxu0 0
    %1328 = vmatprep.subr.bf16.mxu0 0
    %1329 = vmatpush1.bf16.msra.mxu0 0
    %1330 = vmatprep.subr.bf16.mxu0 0
    %1331 = vmatpush1.bf16.msra.mxu0 0
    %1332 = vmatprep.subr.bf16.mxu0 0
    %1333 = vmatpush1.bf16.msra.mxu0 0
    %1334 = vmatprep.subr.bf16.mxu0 0
    %1335 = vmatpush1.bf16.msra.mxu0 0
    %1336 = vmatprep.mubr.bf16.mxu0 0
    %1337 = vmatmul.mubr.bf16.gmra.mrb[0].mxu0 %v1260
    %v1338 = vpop.f32.mrb[0].mxu0
    %v1339 = vadd.f32 0.0, %v1338
    %v1340 = vpop.f32.mrb[0].mxu0
    %v1341 = vadd.f32 0.0, %v1340
    %v1342 = vpop.f32.mrb[0].mxu0
    %v1343 = vadd.f32 0.0, %v1342
    %v1344 = vpop.f32.mrb[0].mxu0
    %v1345 = vadd.f32 0.0, %v1344
    %1346 = vdwg.mxu0
    %v1347 = vadd.f32 %v1252, %v1296
    %v1348 = vadd.f32 %v1253, %v1298
    %v1349 = vadd.f32 %v1254, %v1339
    %v1350 = vadd.f32 %v1255, %v1341
    %v1351 = vadd.f32 %v1256, %v1300
    %v1352 = vadd.f32 %v1257, %v1302
    %v1353 = vadd.f32 %v1258, %v1343
    %v1354 = vadd.f32 %v1259, %v1345
    %v1355 = vmul.f32 %v1347, 0.5
    %v1356 = vmul.f32 %v1351, 0.5
    %v1357 = vtanh.pop %v1355
    %v1358 = vtanh.pop %v1356
    %v1359 = vmul.f32 %v1357, 0.5
    %v1360 = vmul.f32 %v1358, 0.5
    %v1361 = vadd.f32 %v1359, 0.5
    %v1362 = vadd.f32 %v1360, 0.5
    %v1363 = vmul.f32 %v1348, 0.5
    %v1364 = vmul.f32 %v1352, 0.5
    %v1365 = vtanh.pop %v1363
    %v1366 = vtanh.pop %v1364
    %v1367 = vmul.f32 %v1365, 0.5
    %v1368 = vmul.f32 %v1366, 0.5
    %v1369 = vadd.f32 %v1367, 0.5
    %v1370 = vadd.f32 %v1368, 0.5
    %v1371 = vtanh.pop %v1349
    %v1372 = vtanh.pop %v1353
    %v1373 = vmul.f32 %v1350, 0.5
    %v1374 = vmul.f32 %v1354, 0.5
    %v1375 = vtanh.pop %v1373
    %v1376 = vtanh.pop %v1374
    %v1377 = vmul.f32 %v1375, 0.5
    %v1378 = vmul.f32 %v1376, 0.5
    %v1379 = vadd.f32 %v1377, 0.5
    %v1380 = vadd.f32 %v1378, 0.5
    %v1381 = vmul.f32 %v1369, %v1239
    %v1382 = vmul.f32 %v1370, %v1240
    %v1383 = vmul.f32 %v1361, %v1371
    %v1384 = vmul.f32 %v1362, %v1372
    %v1385 = vadd.f32 %v1381, %v1383
    %v1386 = vadd.f32 %v1382, %v1384
    %v1387 = vtanh.pop %v1385
    %v1388 = vtanh.pop %v1386
    %v1389 = vmul.f32 %v1379, %v1387
    %v1390 = vmul.f32 %v1380, %v1388
    %s1391 = smul.u32 5, 4
    %s1392 = smul.addr %s1391, 8
    %s1393 = scalar_lea.vmem [#allocation2], %s1392
    %v1394 = vld [vmem:[%s1393] sm:$0xff]
    %v1395 = vld [vmem:[%s1393 + $0x8] sm:$0xff]
    %v1396 = vld [vmem:[%s1393 + $0x10] sm:$0xff]
    %v1397 = vld [vmem:[%s1393 + $0x18] sm:$0xff]
    %v1398 = vunpack.c.l.bf16 %v1394
    %v1399 = vunpack.c.l.bf16 %v1395
    %v1400 = vunpack.c.l.bf16 %v1396
    %v1401 = vunpack.c.l.bf16 %v1397
    %v1402 = vunpack.c.h.bf16 %v1394
    %v1403 = vunpack.c.h.bf16 %v1395
    %v1404 = vunpack.c.h.bf16 %v1396
    %v1405 = vunpack.c.h.bf16 %v1397
    %v1406 = vpack.c.bf16 %v1390, %v1389
    %1407 = vmatprep.subr.bf16.mxu0 %v614
    %1408 = vmatpush1.bf16.msra.mxu0 %v613
    %1409 = vmatprep.subr.bf16.mxu0 %v618
    %1410 = vmatpush1.bf16.msra.mxu0 %v617
    %1411 = vmatprep.subr.bf16.mxu0 %v622
    %1412 = vmatpush1.bf16.msra.mxu0 %v621
    %1413 = vmatprep.subr.bf16.mxu0 %v626
    %1414 = vmatpush1.bf16.msra.mxu0 %v625
    %1415 = vmatprep.subr.bf16.mxu0 %v630
    %1416 = vmatpush1.bf16.msra.mxu0 %v629
    %1417 = vmatprep.subr.bf16.mxu0 %v634
    %1418 = vmatpush1.bf16.msra.mxu0 %v633
    %1419 = vmatprep.subr.bf16.mxu0 %v638
    %1420 = vmatpush1.bf16.msra.mxu0 %v637
    %1421 = vmatprep.subr.bf16.mxu0 %v642
    %1422 = vmatpush1.bf16.msra.mxu0 %v641
    %1423 = vmatprep.subr.bf16.mxu0 0
    %1424 = vmatpush1.bf16.msra.mxu0 0
    %1425 = vmatprep.subr.bf16.mxu0 0
    %1426 = vmatpush1.bf16.msra.mxu0 0
    %1427 = vmatprep.subr.bf16.mxu0 0
    %1428 = vmatpush1.bf16.msra.mxu0 0
    %1429 = vmatprep.subr.bf16.mxu0 0
    %1430 = vmatpush1.bf16.msra.mxu0 0
    %1431 = vmatprep.subr.bf16.mxu0 0
    %1432 = vmatpush1.bf16.msra.mxu0 0
    %1433 = vmatprep.subr.bf16.mxu0 0
    %1434 = vmatpush1.bf16.msra.mxu0 0
    %1435 = vmatprep.subr.bf16.mxu0 0
    %1436 = vmatpush1.bf16.msra.mxu0 0
    %1437 = vmatprep.subr.bf16.mxu0 0
    %1438 = vmatpush1.bf16.msra.mxu0 0
    %1439 = vmatprep.mubr.bf16.mxu0 0
    %1440 = vmatmul.mubr.bf16.gmra.mrb[0].mxu0 %v1406
    %v1441 = vpop.f32.mrb[0].mxu0
    %v1442 = vadd.f32 0.0, %v1441
    %v1443 = vpop.f32.mrb[0].mxu0
    %v1444 = vadd.f32 0.0, %v1443
    %v1445 = vpop.f32.mrb[0].mxu0
    %v1446 = vadd.f32 0.0, %v1445
    %v1447 = vpop.f32.mrb[0].mxu0
    %v1448 = vadd.f32 0.0, %v1447
    %1449 = vdwg.mxu0
    %1450 = vmatprep.subr.bf16.mxu0 %v616
    %1451 = vmatpush1.bf16.msra.mxu0 %v615
    %1452 = vmatprep.subr.bf16.mxu0 %v620
    %1453 = vmatpush1.bf16.msra.mxu0 %v619
    %1454 = vmatprep.subr.bf16.mxu0 %v624
    %1455 = vmatpush1.bf16.msra.mxu0 %v623
    %1456 = vmatprep.subr.bf16.mxu0 %v628
    %1457 = vmatpush1.bf16.msra.mxu0 %v627
    %1458 = vmatprep.subr.bf16.mxu0 %v632
    %1459 = vmatpush1.bf16.msra.mxu0 %v631
    %1460 = vmatprep.subr.bf16.mxu0 %v636
    %1461 = vmatpush1.bf16.msra.mxu0 %v635
    %1462 = vmatprep.subr.bf16.mxu0 %v640
    %1463 = vmatpush1.bf16.msra.mxu0 %v639
    %1464 = vmatprep.subr.bf16.mxu0 %v644
    %1465 = vmatpush1.bf16.msra.mxu0 %v643
    %1466 = vmatprep.subr.bf16.mxu0 0
    %1467 = vmatpush1.bf16.msra.mxu0 0
    %1468 = vmatprep.subr.bf16.mxu0 0
    %1469 = vmatpush1.bf16.msra.mxu0 0
    %1470 = vmatprep.subr.bf16.mxu0 0
    %1471 = vmatpush1.bf16.msra.mxu0 0
    %1472 = vmatprep.subr.bf16.mxu0 0
    %1473 = vmatpush1.bf16.msra.mxu0 0
    %1474 = vmatprep.subr.bf16.mxu0 0
    %1475 = vmatpush1.bf16.msra.mxu0 0
    %1476 = vmatprep.subr.bf16.mxu0 0
    %1477 = vmatpush1.bf16.msra.mxu0 0
    %1478 = vmatprep.subr.bf16.mxu0 0
    %1479 = vmatpush1.bf16.msra.mxu0 0
    %1480 = vmatprep.subr.bf16.mxu0 0
    %1481 = vmatpush1.bf16.msra.mxu0 0
    %1482 = vmatprep.mubr.bf16.mxu0 0
    %1483 = vmatmul.mubr.bf16.gmra.mrb[0].mxu0 %v1406
    %v1484 = vpop.f32.mrb[0].mxu0
    %v1485 = vadd.f32 0.0, %v1484
    %v1486 = vpop.f32.mrb[0].mxu0
    %v1487 = vadd.f32 0.0, %v1486
    %v1488 = vpop.f32.mrb[0].mxu0
    %v1489 = vadd.f32 0.0, %v1488
    %v1490 = vpop.f32.mrb[0].mxu0
    %v1491 = vadd.f32 0.0, %v1490
    %1492 = vdwg.mxu0
    %v1493 = vadd.f32 %v1398, %v1442
    %v1494 = vadd.f32 %v1399, %v1444
    %v1495 = vadd.f32 %v1400, %v1485
    %v1496 = vadd.f32 %v1401, %v1487
    %v1497 = vadd.f32 %v1402, %v1446
    %v1498 = vadd.f32 %v1403, %v1448
    %v1499 = vadd.f32 %v1404, %v1489
    %v1500 = vadd.f32 %v1405, %v1491
    %v1501 = vmul.f32 %v1493, 0.5
    %v1502 = vmul.f32 %v1497, 0.5
    %v1503 = vtanh.pop %v1501
    %v1504 = vtanh.pop %v1502
    %v1505 = vmul.f32 %v1503, 0.5
    %v1506 = vmul.f32 %v1504, 0.5
    %v1507 = vadd.f32 %v1505, 0.5
    %v1508 = vadd.f32 %v1506, 0.5
    %v1509 = vmul.f32 %v1494, 0.5
    %v1510 = vmul.f32 %v1498, 0.5
    %v1511 = vtanh.pop %v1509
    %v1512 = vtanh.pop %v1510
    %v1513 = vmul.f32 %v1511, 0.5
    %v1514 = vmul.f32 %v1512, 0.5
    %v1515 = vadd.f32 %v1513, 0.5
    %v1516 = vadd.f32 %v1514, 0.5
    %v1517 = vtanh.pop %v1495
    %v1518 = vtanh.pop %v1499
    %v1519 = vmul.f32 %v1496, 0.5
    %v1520 = vmul.f32 %v1500, 0.5
    %v1521 = vtanh.pop %v1519
    %v1522 = vtanh.pop %v1520
    %v1523 = vmul.f32 %v1521, 0.5
    %v1524 = vmul.f32 %v1522, 0.5
    %v1525 = vadd.f32 %v1523, 0.5
    %v1526 = vadd.f32 %v1524, 0.5
    %v1527 = vmul.f32 %v1515, %v1385
    %v1528 = vmul.f32 %v1516, %v1386
    %v1529 = vmul.f32 %v1507, %v1517
    %v1530 = vmul.f32 %v1508, %v1518
    %v1531 = vadd.f32 %v1527, %v1529
    %v1532 = vadd.f32 %v1528, %v1530
    %v1533 = vtanh.pop %v1531
    %v1534 = vtanh.pop %v1532
    %v1535 = vmul.f32 %v1525, %v1533
    %v1536 = vmul.f32 %v1526, %v1534
    %s1537 = smul.u32 6, 4
    %s1538 = smul.addr %s1537, 8
    %s1539 = scalar_lea.vmem [#allocation2], %s1538
    %v1540 = vld [vmem:[%s1539] sm:$0xff]
    %v1541 = vld [vmem:[%s1539 + $0x8] sm:$0xff]
    %v1542 = vld [vmem:[%s1539 + $0x10] sm:$0xff]
    %v1543 = vld [vmem:[%s1539 + $0x18] sm:$0xff]
    %v1544 = vunpack.c.l.bf16 %v1540
    %v1545 = vunpack.c.l.bf16 %v1541
    %v1546 = vunpack.c.l.bf16 %v1542
    %v1547 = vunpack.c.l.bf16 %v1543
    %v1548 = vunpack.c.h.bf16 %v1540
    %v1549 = vunpack.c.h.bf16 %v1541
    %v1550 = vunpack.c.h.bf16 %v1542
    %v1551 = vunpack.c.h.bf16 %v1543
    %v1552 = vpack.c.bf16 %v1536, %v1535
    %1553 = vmatprep.subr.bf16.mxu0 %v614
    %1554 = vmatpush1.bf16.msra.mxu0 %v613
    %1555 = vmatprep.subr.bf16.mxu0 %v618
    %1556 = vmatpush1.bf16.msra.mxu0 %v617
    %1557 = vmatprep.subr.bf16.mxu0 %v622
    %1558 = vmatpush1.bf16.msra.mxu0 %v621
    %1559 = vmatprep.subr.bf16.mxu0 %v626
    %1560 = vmatpush1.bf16.msra.mxu0 %v625
    %1561 = vmatprep.subr.bf16.mxu0 %v630
    %1562 = vmatpush1.bf16.msra.mxu0 %v629
    %1563 = vmatprep.subr.bf16.mxu0 %v634
    %1564 = vmatpush1.bf16.msra.mxu0 %v633
    %1565 = vmatprep.subr.bf16.mxu0 %v638
    %1566 = vmatpush1.bf16.msra.mxu0 %v637
    %1567 = vmatprep.subr.bf16.mxu0 %v642
    %1568 = vmatpush1.bf16.msra.mxu0 %v641
    %1569 = vmatprep.subr.bf16.mxu0 0
    %1570 = vmatpush1.bf16.msra.mxu0 0
    %1571 = vmatprep.subr.bf16.mxu0 0
    %1572 = vmatpush1.bf16.msra.mxu0 0
    %1573 = vmatprep.subr.bf16.mxu0 0
    %1574 = vmatpush1.bf16.msra.mxu0 0
    %1575 = vmatprep.subr.bf16.mxu0 0
    %1576 = vmatpush1.bf16.msra.mxu0 0
    %1577 = vmatprep.subr.bf16.mxu0 0
    %1578 = vmatpush1.bf16.msra.mxu0 0
    %1579 = vmatprep.subr.bf16.mxu0 0
    %1580 = vmatpush1.bf16.msra.mxu0 0
    %1581 = vmatprep.subr.bf16.mxu0 0
    %1582 = vmatpush1.bf16.msra.mxu0 0
    %1583 = vmatprep.subr.bf16.mxu0 0
    %1584 = vmatpush1.bf16.msra.mxu0 0
    %1585 = vmatprep.mubr.bf16.mxu0 0
    %1586 = vmatmul.mubr.bf16.gmra.mrb[0].mxu0 %v1552
    %v1587 = vpop.f32.mrb[0].mxu0
    %v1588 = vadd.f32 0.0, %v1587
    %v1589 = vpop.f32.mrb[0].mxu0
    %v1590 = vadd.f32 0.0, %v1589
    %v1591 = vpop.f32.mrb[0].mxu0
    %v1592 = vadd.f32 0.0, %v1591
    %v1593 = vpop.f32.mrb[0].mxu0
    %v1594 = vadd.f32 0.0, %v1593
    %1595 = vdwg.mxu0
    %1596 = vmatprep.subr.bf16.mxu0 %v616
    %1597 = vmatpush1.bf16.msra.mxu0 %v615
    %1598 = vmatprep.subr.bf16.mxu0 %v620
    %1599 = vmatpush1.bf16.msra.mxu0 %v619
    %1600 = vmatprep.subr.bf16.mxu0 %v624
    %1601 = vmatpush1.bf16.msra.mxu0 %v623
    %1602 = vmatprep.subr.bf16.mxu0 %v628
    %1603 = vmatpush1.bf16.msra.mxu0 %v627
    %1604 = vmatprep.subr.bf16.mxu0 %v632
    %1605 = vmatpush1.bf16.msra.mxu0 %v631
    %1606 = vmatprep.subr.bf16.mxu0 %v636
    %1607 = vmatpush1.bf16.msra.mxu0 %v635
    %1608 = vmatprep.subr.bf16.mxu0 %v640
    %1609 = vmatpush1.bf16.msra.mxu0 %v639
    %1610 = vmatprep.subr.bf16.mxu0 %v644
    %1611 = vmatpush1.bf16.msra.mxu0 %v643
    %1612 = vmatprep.subr.bf16.mxu0 0
    %1613 = vmatpush1.bf16.msra.mxu0 0
    %1614 = vmatprep.subr.bf16.mxu0 0
    %1615 = vmatpush1.bf16.msra.mxu0 0
    %1616 = vmatprep.subr.bf16.mxu0 0
    %1617 = vmatpush1.bf16.msra.mxu0 0
    %1618 = vmatprep.subr.bf16.mxu0 0
    %1619 = vmatpush1.bf16.msra.mxu0 0
    %1620 = vmatprep.subr.bf16.mxu0 0
    %1621 = vmatpush1.bf16.msra.mxu0 0
    %1622 = vmatprep.subr.bf16.mxu0 0
    %1623 = vmatpush1.bf16.msra.mxu0 0
    %1624 = vmatprep.subr.bf16.mxu0 0
    %1625 = vmatpush1.bf16.msra.mxu0 0
    %1626 = vmatprep.subr.bf16.mxu0 0
    %1627 = vmatpush1.bf16.msra.mxu0 0
    %1628 = vmatprep.mubr.bf16.mxu0 0
    %1629 = vmatmul.mubr.bf16.gmra.mrb[0].mxu0 %v1552
    %v1630 = vpop.f32.mrb[0].mxu0
    %v1631 = vadd.f32 0.0, %v1630
    %v1632 = vpop.f32.mrb[0].mxu0
    %v1633 = vadd.f32 0.0, %v1632
    %v1634 = vpop.f32.mrb[0].mxu0
    %v1635 = vadd.f32 0.0, %v1634
    %v1636 = vpop.f32.mrb[0].mxu0
    %v1637 = vadd.f32 0.0, %v1636
    %1638 = vdwg.mxu0
    %v1639 = vadd.f32 %v1544, %v1588
    %v1640 = vadd.f32 %v1545, %v1590
    %v1641 = vadd.f32 %v1546, %v1631
    %v1642 = vadd.f32 %v1547, %v1633
    %v1643 = vadd.f32 %v1548, %v1592
    %v1644 = vadd.f32 %v1549, %v1594
    %v1645 = vadd.f32 %v1550, %v1635
    %v1646 = vadd.f32 %v1551, %v1637
    %v1647 = vmul.f32 %v1639, 0.5
    %v1648 = vmul.f32 %v1643, 0.5
    %v1649 = vtanh.pop %v1647
    %v1650 = vtanh.pop %v1648
    %v1651 = vmul.f32 %v1649, 0.5
    %v1652 = vmul.f32 %v1650, 0.5
    %v1653 = vadd.f32 %v1651, 0.5
    %v1654 = vadd.f32 %v1652, 0.5
    %v1655 = vmul.f32 %v1640, 0.5
    %v1656 = vmul.f32 %v1644, 0.5
    %v1657 = vtanh.pop %v1655
    %v1658 = vtanh.pop %v1656
    %v1659 = vmul.f32 %v1657, 0.5
    %v1660 = vmul.f32 %v1658, 0.5
    %v1661 = vadd.f32 %v1659, 0.5
    %v1662 = vadd.f32 %v1660, 0.5
    %v1663 = vtanh.pop %v1641
    %v1664 = vtanh.pop %v1645
    %v1665 = vmul.f32 %v1642, 0.5
    %v1666 = vmul.f32 %v1646, 0.5
    %v1667 = vtanh.pop %v1665
    %v1668 = vtanh.pop %v1666
    %v1669 = vmul.f32 %v1667, 0.5
    %v1670 = vmul.f32 %v1668, 0.5
    %v1671 = vadd.f32 %v1669, 0.5
    %v1672 = vadd.f32 %v1670, 0.5
    %v1673 = vmul.f32 %v1661, %v1531
    %v1674 = vmul.f32 %v1662, %v1532
    %v1675 = vmul.f32 %v1653, %v1663
    %v1676 = vmul.f32 %v1654, %v1664
    %v1677 = vadd.f32 %v1673, %v1675
    %v1678 = vadd.f32 %v1674, %v1676
    %v1679 = vtanh.pop %v1677
    %v1680 = vtanh.pop %v1678
    %v1681 = vmul.f32 %v1671, %v1679
    %v1682 = vmul.f32 %v1672, %v1680
    %s1683 = smul.u32 7, 4
    %s1684 = smul.addr %s1683, 8
    %s1685 = scalar_lea.vmem [#allocation2], %s1684
    %v1686 = vld [vmem:[%s1685] sm:$0xff]
    %v1687 = vld [vmem:[%s1685 + $0x8] sm:$0xff]
    %v1688 = vld [vmem:[%s1685 + $0x10] sm:$0xff]
    %v1689 = vld [vmem:[%s1685 + $0x18] sm:$0xff]
    %v1690 = vunpack.c.l.bf16 %v1686
    %v1691 = vunpack.c.l.bf16 %v1687
    %v1692 = vunpack.c.l.bf16 %v1688
    %v1693 = vunpack.c.l.bf16 %v1689
    %v1694 = vunpack.c.h.bf16 %v1686
    %v1695 = vunpack.c.h.bf16 %v1687
    %v1696 = vunpack.c.h.bf16 %v1688
    %v1697 = vunpack.c.h.bf16 %v1689
    %v1698 = vpack.c.bf16 %v1682, %v1681
    %1699 = vmatprep.subr.bf16.mxu0 %v614
    %1700 = vmatpush1.bf16.msra.mxu0 %v613
    %1701 = vmatprep.subr.bf16.mxu0 %v618
    %1702 = vmatpush1.bf16.msra.mxu0 %v617
    %1703 = vmatprep.subr.bf16.mxu0 %v622
    %1704 = vmatpush1.bf16.msra.mxu0 %v621
    %1705 = vmatprep.subr.bf16.mxu0 %v626
    %1706 = vmatpush1.bf16.msra.mxu0 %v625
    %1707 = vmatprep.subr.bf16.mxu0 %v630
    %1708 = vmatpush1.bf16.msra.mxu0 %v629
    %1709 = vmatprep.subr.bf16.mxu0 %v634
    %1710 = vmatpush1.bf16.msra.mxu0 %v633
    %1711 = vmatprep.subr.bf16.mxu0 %v638
    %1712 = vmatpush1.bf16.msra.mxu0 %v637
    %1713 = vmatprep.subr.bf16.mxu0 %v642
    %1714 = vmatpush1.bf16.msra.mxu0 %v641
    %1715 = vmatprep.subr.bf16.mxu0 0
    %1716 = vmatpush1.bf16.msra.mxu0 0
    %1717 = vmatprep.subr.bf16.mxu0 0
    %1718 = vmatpush1.bf16.msra.mxu0 0
    %1719 = vmatprep.subr.bf16.mxu0 0
    %1720 = vmatpush1.bf16.msra.mxu0 0
    %1721 = vmatprep.subr.bf16.mxu0 0
    %1722 = vmatpush1.bf16.msra.mxu0 0
    %1723 = vmatprep.subr.bf16.mxu0 0
    %1724 = vmatpush1.bf16.msra.mxu0 0
    %1725 = vmatprep.subr.bf16.mxu0 0
    %1726 = vmatpush1.bf16.msra.mxu0 0
    %1727 = vmatprep.subr.bf16.mxu0 0
    %1728 = vmatpush1.bf16.msra.mxu0 0
    %1729 = vmatprep.subr.bf16.mxu0 0
    %1730 = vmatpush1.bf16.msra.mxu0 0
    %1731 = vmatprep.mubr.bf16.mxu0 0
    %1732 = vmatmul.mubr.bf16.gmra.mrb[0].mxu0 %v1698
    %v1733 = vpop.f32.mrb[0].mxu0
    %v1734 = vadd.f32 0.0, %v1733
    %v1735 = vpop.f32.mrb[0].mxu0
    %v1736 = vadd.f32 0.0, %v1735
    %v1737 = vpop.f32.mrb[0].mxu0
    %v1738 = vadd.f32 0.0, %v1737
    %v1739 = vpop.f32.mrb[0].mxu0
    %v1740 = vadd.f32 0.0, %v1739
    %1741 = vdwg.mxu0
    %1742 = vmatprep.subr.bf16.mxu0 %v616
    %1743 = vmatpush1.bf16.msra.mxu0 %v615
    %1744 = vmatprep.subr.bf16.mxu0 %v620
    %1745 = vmatpush1.bf16.msra.mxu0 %v619
    %1746 = vmatprep.subr.bf16.mxu0 %v624
    %1747 = vmatpush1.bf16.msra.mxu0 %v623
    %1748 = vmatprep.subr.bf16.mxu0 %v628
    %1749 = vmatpush1.bf16.msra.mxu0 %v627
    %1750 = vmatprep.subr.bf16.mxu0 %v632
    %1751 = vmatpush1.bf16.msra.mxu0 %v631
    %1752 = vmatprep.subr.bf16.mxu0 %v636
    %1753 = vmatpush1.bf16.msra.mxu0 %v635
    %1754 = vmatprep.subr.bf16.mxu0 %v640
    %1755 = vmatpush1.bf16.msra.mxu0 %v639
    %1756 = vmatprep.subr.bf16.mxu0 %v644
    %1757 = vmatpush1.bf16.msra.mxu0 %v643
    %1758 = vmatprep.subr.bf16.mxu0 0
    %1759 = vmatpush1.bf16.msra.mxu0 0
    %1760 = vmatprep.subr.bf16.mxu0 0
    %1761 = vmatpush1.bf16.msra.mxu0 0
    %1762 = vmatprep.subr.bf16.mxu0 0
    %1763 = vmatpush1.bf16.msra.mxu0 0
    %1764 = vmatprep.subr.bf16.mxu0 0
    %1765 = vmatpush1.bf16.msra.mxu0 0
    %1766 = vmatprep.subr.bf16.mxu0 0
    %1767 = vmatpush1.bf16.msra.mxu0 0
    %1768 = vmatprep.subr.bf16.mxu0 0
    %1769 = vmatpush1.bf16.msra.mxu0 0
    %1770 = vmatprep.subr.bf16.mxu0 0
    %1771 = vmatpush1.bf16.msra.mxu0 0
    %1772 = vmatprep.subr.bf16.mxu0 0
    %1773 = vmatpush1.bf16.msra.mxu0 0
    %1774 = vmatprep.mubr.bf16.mxu0 0
    %1775 = vmatmul.mubr.bf16.gmra.mrb[0].mxu0 %v1698
    %v1776 = vpop.f32.mrb[0].mxu0
    %v1777 = vadd.f32 0.0, %v1776
    %v1778 = vpop.f32.mrb[0].mxu0
    %v1779 = vadd.f32 0.0, %v1778
    %v1780 = vpop.f32.mrb[0].mxu0
    %v1781 = vadd.f32 0.0, %v1780
    %v1782 = vpop.f32.mrb[0].mxu0
    %v1783 = vadd.f32 0.0, %v1782
    %1784 = vdwg.mxu0
    %v1785 = vadd.f32 %v1690, %v1734
    %v1786 = vadd.f32 %v1691, %v1736
    %v1787 = vadd.f32 %v1692, %v1777
    %v1788 = vadd.f32 %v1693, %v1779
    %v1789 = vadd.f32 %v1694, %v1738
    %v1790 = vadd.f32 %v1695, %v1740
    %v1791 = vadd.f32 %v1696, %v1781
    %v1792 = vadd.f32 %v1697, %v1783
    %v1793 = vmul.f32 %v1785, 0.5
    %v1794 = vmul.f32 %v1789, 0.5
    %v1795 = vtanh.pop %v1793
    %v1796 = vtanh.pop %v1794
    %v1797 = vmul.f32 %v1795, 0.5
    %v1798 = vmul.f32 %v1796, 0.5
    %v1799 = vadd.f32 %v1797, 0.5
    %v1800 = vadd.f32 %v1798, 0.5
    %v1801 = vmul.f32 %v1786, 0.5
    %v1802 = vmul.f32 %v1790, 0.5
    %v1803 = vtanh.pop %v1801
    %v1804 = vtanh.pop %v1802
    %v1805 = vmul.f32 %v1803, 0.5
    %v1806 = vmul.f32 %v1804, 0.5
    %v1807 = vadd.f32 %v1805, 0.5
    %v1808 = vadd.f32 %v1806, 0.5
    %v1809 = vtanh.pop %v1787
    %v1810 = vtanh.pop %v1791
    %v1811 = vmul.f32 %v1788, 0.5
    %v1812 = vmul.f32 %v1792, 0.5
    %v1813 = vtanh.pop %v1811
    %v1814 = vtanh.pop %v1812
    %v1815 = vmul.f32 %v1813, 0.5
    %v1816 = vmul.f32 %v1814, 0.5
    %v1817 = vadd.f32 %v1815, 0.5
    %v1818 = vadd.f32 %v1816, 0.5
    %v1819 = vmul.f32 %v1807, %v1677
    %v1820 = vmul.f32 %v1808, %v1678
    %v1821 = vmul.f32 %v1799, %v1809
    %v1822 = vmul.f32 %v1800, %v1810
    %v1823 = vadd.f32 %v1819, %v1821
    %v1824 = vadd.f32 %v1820, %v1822
    %v1825 = vtanh.pop %v1823
    %v1826 = vtanh.pop %v1824
    %v1827 = vmul.f32 %v1817, %v1825
    %v1828 = vmul.f32 %v1818, %v1826
    %v1829 = vpack.c.bf16 %v1828, %v1827
    %v1830 = vld [vmem:[%s4] sm:$0xf]
    %v1831 = vld [vmem:[%s4 + $0x4] sm:$0xf]
    %v1832 = vld [vmem:[%s4 + $0x8] sm:$0xf]
    %v1833 = vld [vmem:[%s4 + $0xc] sm:$0xf]
    %v1834 = vld [vmem:[%s4 + $0x10] sm:$0xf]
    %v1835 = vld [vmem:[%s4 + $0x14] sm:$0xf]
    %v1836 = vld [vmem:[%s4 + $0x18] sm:$0xf]
    %v1837 = vld [vmem:[%s4 + $0x1c] sm:$0xf]
    %v1838 = vld [vmem:[%s4 + $0x20] sm:$0xf]
    %v1839 = vld [vmem:[%s4 + $0x24] sm:$0xf]
    %v1840 = vld [vmem:[%s4 + $0x28] sm:$0xf]
    %v1841 = vld [vmem:[%s4 + $0x2c] sm:$0xf]
    %v1842 = vld [vmem:[%s4 + $0x30] sm:$0xf]
    %v1843 = vld [vmem:[%s4 + $0x34] sm:$0xf]
    %v1844 = vld [vmem:[%s4 + $0x38] sm:$0xf]
    %v1845 = vld [vmem:[%s4 + $0x3c] sm:$0xf]
    %v1846 = vld [vmem:[%s5] sm:$0x1]
    %v1848 = vlaneseq
    %v1849 = vshrl.u32 %v1848, 7
    %v1850 = vsub.s32 0, %v1849
    %v1851 = vrot.slane %v1846, %v1850
    %v1869 = vunpack.c.l.b16 %v1830
    %v1870 = vunpack.c.l.b16 %v1831
    %v1871 = vunpack.c.l.b16 %v1832
    %v1872 = vunpack.c.l.b16 %v1833
    %v1873 = vunpack.c.l.b16 %v1834
    %v1874 = vunpack.c.l.b16 %v1835
    %v1875 = vunpack.c.l.b16 %v1836
    %v1876 = vunpack.c.l.b16 %v1837
    %v1877 = vunpack.c.l.b16 %v1838
    %v1878 = vunpack.c.l.b16 %v1839
    %v1879 = vunpack.c.l.b16 %v1840
    %v1880 = vunpack.c.l.b16 %v1841
    %v1881 = vunpack.c.l.b16 %v1842
    %v1882 = vunpack.c.l.b16 %v1843
    %v1883 = vunpack.c.l.b16 %v1844
    %v1884 = vunpack.c.l.b16 %v1845
    %v1885 = vpack.c.b16 %v1870, %v1869
    %v1886 = vpack.c.b16 %v1872, %v1871
    %v1887 = vpack.c.b16 %v1874, %v1873
    %v1888 = vpack.c.b16 %v1876, %v1875
    %v1889 = vpack.c.b16 %v1878, %v1877
    %v1890 = vpack.c.b16 %v1880, %v1879
    %v1891 = vpack.c.b16 %v1882, %v1881
    %v1892 = vpack.c.b16 %v1884, %v1883
    %1901 = vmatprep.subr.bf16.mxu0 0
    %1902 = vmatpush1.bf16.msra.mxu0 %v1885
    %1903 = vmatprep.subr.bf16.mxu0 0
    %1904 = vmatpush1.bf16.msra.mxu0 %v1886
    %1905 = vmatprep.subr.bf16.mxu0 0
    %1906 = vmatpush1.bf16.msra.mxu0 %v1887
    %1907 = vmatprep.subr.bf16.mxu0 0
    %1908 = vmatpush1.bf16.msra.mxu0 %v1888
    %1909 = vmatprep.subr.bf16.mxu0 0
    %1910 = vmatpush1.bf16.msra.mxu0 %v1889
    %1911 = vmatprep.subr.bf16.mxu0 0
    %1912 = vmatpush1.bf16.msra.mxu0 %v1890
    %1913 = vmatprep.subr.bf16.mxu0 0
    %1914 = vmatpush1.bf16.msra.mxu0 %v1891
    %1915 = vmatprep.subr.bf16.mxu0 0
    %1916 = vmatpush1.bf16.msra.mxu0 %v1892
    %1917 = vmatprep.subr.bf16.mxu0 0
    %1918 = vmatpush1.bf16.msra.mxu0 0
    %1919 = vmatprep.subr.bf16.mxu0 0
    %1920 = vmatpush1.bf16.msra.mxu0 0
    %1921 = vmatprep.subr.bf16.mxu0 0
    %1922 = vmatpush1.bf16.msra.mxu0 0
    %1923 = vmatprep.subr.bf16.mxu0 0
    %1924 = vmatpush1.bf16.msra.mxu0 0
    %1925 = vmatprep.subr.bf16.mxu0 0
    %1926 = vmatpush1.bf16.msra.mxu0 0
    %1927 = vmatprep.subr.bf16.mxu0 0
    %1928 = vmatpush1.bf16.msra.mxu0 0
    %1929 = vmatprep.subr.bf16.mxu0 0
    %1930 = vmatpush1.bf16.msra.mxu0 0
    %1931 = vmatprep.subr.bf16.mxu0 0
    %1932 = vmatpush1.bf16.msra.mxu0 0
    %1933 = vmatprep.mubr.bf16.mxu0 0
    %1934 = vmatmul.mubr.bf16.gmra.mrb[0].mxu0 %v1829
    %v1935 = vpop.f32.mrb[0].mxu0
    %v1936 = vadd.f32 %v1851, %v1935
    %v1937 = vpop.f32.mrb[0].mxu0
    %v1938 = vpop.f32.mrb[0].mxu0
    %v1939 = vadd.f32 %v1851, %v1938
    %v1940 = vpop.f32.mrb[0].mxu0
    %1941 = vdwg.mxu0
    %1942 = vst [vmem:[#allocation8] sm:$0xff] %v1936
    %1943 = vst [vmem:[#allocation8 + $0x8] sm:$0xff] %v1939
    // Predicated region
    $region34: #{tpu_custom_call.1} parent=1 // pred_check
      _
    $region35: #{tpu_custom_call.1} parent=1 // pred_check_branch
      %1945 = sbr.rel (0) target = $region37
    $region36: #{tpu_custom_call.1} parent=1 // pred_region
      %s1947 = ssub.s32 256, 256
      %1948 = vsyncadd [#allocation5], %s1947
      %s1949 = sshll.u32 [#allocation8], 4
      %s1950 = int_to_ptr.vmem [resolvable:$true] %s1949
      %1955 = dma.vmem_to_hbm [thread:$0]  %s1950, 256, %s6, [#allocation5], 128, 128, 8
    $region37: #{tpu_custom_call.1} parent=1 // pred_fallthru
      _
    // Predicated region
    $region38: #{tpu_custom_call.1} parent=1 // pred_check
      _
    $region39: #{tpu_custom_call.1} parent=1 // pred_check_branch
      %1957 = sbr.rel (0) target = $region41
    $region40: #{tpu_custom_call.1} parent=1 // pred_region
      %1958 = dma.done [#allocation5], 256
    $region41: #{tpu_custom_call.1} parent=1 // pred_fallthru
      _
    %1959 = vsyncpa [#allocation4], 1
    %1960 = vsyncpa [#allocation7], 1
    %1961 = vsyncpa [#allocation5], 1

</llo_original>
